<compile_context>
chip_gen: v7x
topology: tpu7x:2x2x1
jax: 0.10.0
libtpu: 0.0.40
codegen_flags: <defaults>
</compile_context>

<pallas_src>
import functools
import math

import jax
import jax.numpy as jnp
from jax import lax
from jax.experimental import pallas as pl
from jax.experimental.pallas import tpu as pltpu

# ---------------- synthetic small config ----------------
VOCAB_SIZE = 128
HIDDEN = 128                           # lane-dense (multiple of 128)
NUM_HEADS = 4
NUM_KV_HEADS = 2                       # GQA (Falcon uses MQA/GQA)
HEAD_DIM = HIDDEN // NUM_HEADS         # 32
FFN_HIDDEN = 4 * HIDDEN                # 512
NUM_LAYERS = 2
LN_EPS = 1e-5
ROPE_BASE = 10000.0
SEQ_LEN = 8
QKV_OUT = (NUM_HEADS + 2 * NUM_KV_HEADS) * HEAD_DIM   # 256


# ---------------- in-kernel helpers (f32 elementwise) ----------------
def _layernorm_f32(x, g, b, eps):
    mean = jnp.mean(x, axis=-1, keepdims=True)
    xc = x - mean
    var = jnp.mean(xc * xc, axis=-1, keepdims=True)
    return xc * lax.rsqrt(var + eps) * g + b


def _rope(x, cos, sin):
    # rotate_half(x) = concat(-x[..., d/2:], x[..., :d/2])
    hd = x.shape[-1]
    x1 = x[..., : hd // 2]
    x2 = x[..., hd // 2:]
    rot = jnp.concatenate([-x2, x1], axis=-1)
    return x * cos + rot * sin


def _gelu_tanh(x):
    # TODO(synk): torch nn.GELU() default is the exact erf form; tanh approximation
    # used here for Mosaic-safe EUP lowering (small numerical drift expected).
    c = math.sqrt(2.0 / math.pi)
    return 0.5 * x * (1.0 + jnp.tanh(c * (x + 0.044715 * x * x * x)))


# ---------------- whole-model fused kernel (grid over layers) ----------------
def _falcon_model_kernel(x_ref, cos_ref, sin_ref,
                         lng_ref, lnb_ref, wqkv_ref, wd_ref, w1_ref, w2_ref,
                         lnfg_ref, lnfb_ref,
                         o_ref,
                         x_scr, *,
                         num_heads, num_kv_heads, head_dim, eps, scale):
    layer = pl.program_id(0)

    # layer 0: load the embedding output into the resident f32 residual scratch
    @pl.when(layer == 0)
    def _():
        x_scr[...] = x_ref[...].astype(jnp.float32)

    x = x_scr[...]                                        # (T, H) residual, f32
    T = x.shape[0]
    group = num_heads // num_kv_heads

    # input layernorm (parallel_attn=True: shared by attention and MLP branches)
    ln = _layernorm_f32(x, lng_ref[...], lnb_ref[...], eps)
    ln_bf = ln.astype(jnp.bfloat16)

    # fused QKV projection (bf16 operands, f32 accumulation); stays in VMEM
    qkv = jnp.dot(ln_bf, wqkv_ref[...], preferred_element_type=jnp.float32)

    # ---- attention: all heads handled by ONE batched contraction ----
    # single reshape + single transpose to head-major (heads, T, head_dim)
    qkv3 = jnp.transpose(
        qkv.reshape(T, num_heads + 2 * num_kv_heads, head_dim), (1, 0, 2))
    q = qkv3[:num_heads]                                  # (NH,  T, Dh)
    k = qkv3[num_heads:num_heads + num_kv_heads]          # (NKV, T, Dh)
    v = qkv3[num_heads + num_kv_heads:]                   # (NKV, T, Dh)

    cos = cos_ref[...][None, :, :]                        # (1, T, Dh), bcast over heads
    sin = sin_ref[...][None, :, :]

    # RoPE in f32; softmax scale folded into q.  K/V are RoPE'd / cast ONCE per
    # kv head (hoisted out of the GQA group), then expanded as a cheap bf16 bcast.
    q = (_rope(q, cos, sin) * scale).astype(jnp.bfloat16)
    k = _rope(k, cos, sin).astype(jnp.bfloat16)
    v = v.astype(jnp.bfloat16)
    if group > 1:
        k = jnp.broadcast_to(k[:, None], (num_kv_heads, group, T, head_dim)
                             ).reshape(num_heads, T, head_dim)
        v = jnp.broadcast_to(v[:, None], (num_kv_heads, group, T, head_dim)
                             ).reshape(num_heads, T, head_dim)

    # scores over all heads in one dot_general (bf16 operands, f32 acc)
    s = jnp.einsum('hqd,hkd->hqk', q, k,
                   preferred_element_type=jnp.float32)     # (NH, T, T)
    row = lax.broadcasted_iota(jnp.int32, (T, T), 0)
    col = lax.broadcasted_iota(jnp.int32, (T, T), 1)
    s = jnp.where((col <= row)[None], s, -1e30)            # causal mask (prefill)
    m = jnp.max(s, axis=-1, keepdims=True)
    p = jnp.exp(s - m)
    denom = jnp.sum(p, axis=-1, keepdims=True)
    p = p * pl.reciprocal(denom, approx=True)              # EUP reciprocal
    o = jnp.einsum('hqk,hkd->hqd', p.astype(jnp.bfloat16), v,
                   preferred_element_type=jnp.float32)     # (NH, T, Dh)

    # lane-dense (T, H) attention output: one transpose+reshape, no 16-wide concat
    attn = jnp.transpose(o, (1, 0, 2)).reshape(T, num_heads * head_dim)
    attn_out = jnp.dot(attn.astype(jnp.bfloat16), wd_ref[...],
                       preferred_element_type=jnp.float32)

    # ---- parallel MLP branch on the same layernorm output ----
    h4 = _gelu_tanh(jnp.dot(ln_bf, w1_ref[...], preferred_element_type=jnp.float32))
    mlp_out = jnp.dot(h4.astype(jnp.bfloat16), w2_ref[...],
                      preferred_element_type=jnp.float32)

    # mlp_output += attention_output; outputs = mlp_output + residual
    x_scr[...] = mlp_out + attn_out + x

    # last layer: fused final LayerNorm, single lane-dense store of the output
    @pl.when(layer == pl.num_programs(0) - 1)
    def _():
        o_ref[...] = _layernorm_f32(x_scr[...], lnfg_ref[...], lnfb_ref[...],
                                    eps).astype(o_ref.dtype)


def falcon_model_pallas(params, x, cos, sin):
    T, H = x.shape
    L = params["ln_g"].shape[0]
    qkv_out = params["w_qkv"].shape[-1]
    ffn = params["w_h_to_4h"].shape[-1]
    dh = cos.shape[-1]

    kernel = functools.partial(
        _falcon_model_kernel,
        num_heads=NUM_HEADS, num_kv_heads=NUM_KV_HEADS, head_dim=HEAD_DIM,
        eps=LN_EPS, scale=1.0 / math.sqrt(HEAD_DIM))

    const = lambda l: (0, 0)           # resident across the layer axis
    per_layer = lambda l: (l, 0, 0)    # streamed layer-by-layer (pipelined DMA)

    return pl.pallas_call(
        kernel,
        out_shape=jax.ShapeDtypeStruct((T, H), x.dtype),
        grid=(L,),
        in_specs=[
            pl.BlockSpec((T, H), const),                   # x (embedding output)
            pl.BlockSpec((T, dh), const),                  # cos
            pl.BlockSpec((T, dh), const),                  # sin
            pl.BlockSpec((None, 1, H), per_layer),         # ln gamma  (stacked)
            pl.BlockSpec((None, 1, H), per_layer),         # ln beta
            pl.BlockSpec((None, H, qkv_out), per_layer),   # w_qkv     (bf16)
            pl.BlockSpec((None, H, H), per_layer),         # w_dense   (bf16)
            pl.BlockSpec((None, H, ffn), per_layer),       # w_h_to_4h (bf16)
            pl.BlockSpec((None, ffn, H), per_layer),       # w_4h_to_h (bf16)
            pl.BlockSpec((1, H), const),                   # ln_f gamma
            pl.BlockSpec((1, H), const),                   # ln_f beta
        ],
        out_specs=pl.BlockSpec((T, H), const),             # written only at last layer
        scratch_shapes=[pltpu.VMEM((T, H), jnp.float32)],  # resident residual
        compiler_params=pltpu.CompilerParams(
            dimension_semantics=("arbitrary",)),           # layers are sequential
    )(x, cos, sin,
      params["ln_g"], params["ln_b"], params["w_qkv"], params["w_dense"],
      params["w_h_to_4h"], params["w_4h_to_h"],
      params["ln_f_g"], params["ln_f_b"])


# ---------------- plain-JAX glue ----------------
def rope_cos_sin(position_ids, dim, base=ROPE_BASE, scaling=1.0):
    inv_freq = 1.0 / (base ** (jnp.arange(0, dim, 2, dtype=jnp.float32) / dim))
    pos = position_ids.astype(jnp.float32) / scaling
    freqs = pos[:, None] * inv_freq[None, :]
    emb = jnp.concatenate([freqs, freqs], axis=-1)         # (T, dim)
    return jnp.cos(emb), jnp.sin(emb)


def init_params(key):
    keys = jax.random.split(key, 5)

    def w(k, shape):
        # weights stored in bf16 (MXU operand dtype); accumulation stays f32 in-kernel
        return (0.02 * jax.random.normal(k, shape, dtype=jnp.float32)).astype(jnp.bfloat16)

    return {
        "embed": 0.02 * jax.random.normal(keys[0], (VOCAB_SIZE, HIDDEN), dtype=jnp.float32),
        # per-layer weights stacked along a leading layer axis -> one pallas_call
        # streams them layer-by-layer with double-buffered DMA
        "ln_g": jnp.ones((NUM_LAYERS, 1, HIDDEN), jnp.float32),
        "ln_b": jnp.zeros((NUM_LAYERS, 1, HIDDEN), jnp.float32),
        "w_qkv": w(keys[1], (NUM_LAYERS, HIDDEN, QKV_OUT)),
        "w_dense": w(keys[2], (NUM_LAYERS, HIDDEN, HIDDEN)),
        "w_h_to_4h": w(keys[3], (NUM_LAYERS, HIDDEN, FFN_HIDDEN)),
        "w_4h_to_h": w(keys[4], (NUM_LAYERS, FFN_HIDDEN, HIDDEN)),
        "ln_f_g": jnp.ones((1, HIDDEN), jnp.float32),
        "ln_f_b": jnp.zeros((1, HIDDEN), jnp.float32),
    }


def falcon_model_forward(params, input_ids, position_ids):
    # TODO(synk): word-embedding gather kept in plain JAX (no clean tiny-scale Pallas gather).
    x = jnp.take(params["embed"], input_ids, axis=0)       # (T, H) f32
    cos, sin = rope_cos_sin(position_ids, HEAD_DIM)        # (T, Dh) each
    # entire decoder stack + final LayerNorm: ONE fused pallas_call
    return falcon_model_pallas(params, x, cos, sin)


if __name__ == "__main__":
    key = jax.random.PRNGKey(0)
    k_param, k_ids = jax.random.split(key)
    params = init_params(k_param)
    input_ids = jax.random.randint(k_ids, (SEQ_LEN,), 0, VOCAB_SIZE, dtype=jnp.int32)
    position_ids = jnp.arange(SEQ_LEN, dtype=jnp.int32)

    fwd = jax.jit(falcon_model_forward)
    out = jax.block_until_ready(fwd(params, input_ids, position_ids))
    assert out.shape == (SEQ_LEN, HIDDEN)
    print("KERNEL_OK")
</pallas_src>

<mosaic_0001>
module attributes {stable_mosaic.version = 11 : i64} {
  func.func @_falcon_model_kernel(%arg0: i32, %arg1: memref<8x128xf32, #tpu.memory_space<vmem>>, %arg2: memref<8x32xf32, #tpu.memory_space<vmem>>, %arg3: memref<8x32xf32, #tpu.memory_space<vmem>>, %arg4: memref<1x1x128xf32, #tpu.memory_space<vmem>>, %arg5: memref<1x1x128xf32, #tpu.memory_space<vmem>>, %arg6: memref<1x128x256xbf16, #tpu.memory_space<vmem>>, %arg7: memref<1x128x128xbf16, #tpu.memory_space<vmem>>, %arg8: memref<1x128x512xbf16, #tpu.memory_space<vmem>>, %arg9: memref<1x512x128xbf16, #tpu.memory_space<vmem>>, %arg10: memref<1x128xf32, #tpu.memory_space<vmem>>, %arg11: memref<1x128xf32, #tpu.memory_space<vmem>>, %arg12: memref<8x128xf32, #tpu.memory_space<vmem>>, %arg13: memref<8x128xf32, #tpu.memory_space<vmem>>) attributes {dimension_semantics = [#tpu.dimension_semantics<arbitrary>], iteration_bounds = array<i64: 2>, scalar_prefetch = 0 : i64, scratch_operands = 1 : i64, tpu.core_type = #tpu.core_type<tc>, window_params = [{pipeline_mode = #tpu.pipeline_mode<synchronous>, transform_indices = @transform_0, window_bounds = array<i64: 8, 128>}, {pipeline_mode = #tpu.pipeline_mode<synchronous>, transform_indices = @transform_1, window_bounds = array<i64: 8, 32>}, {pipeline_mode = #tpu.pipeline_mode<synchronous>, transform_indices = @transform_2, window_bounds = array<i64: 8, 32>}, {transform_indices = @transform_3, window_bounds = array<i64: 1, 1, 128>}, {transform_indices = @transform_4, window_bounds = array<i64: 1, 1, 128>}, {transform_indices = @transform_5, window_bounds = array<i64: 1, 128, 256>}, {transform_indices = @transform_6, window_bounds = array<i64: 1, 128, 128>}, {transform_indices = @transform_7, window_bounds = array<i64: 1, 128, 512>}, {transform_indices = @transform_8, window_bounds = array<i64: 1, 512, 128>}, {pipeline_mode = #tpu.pipeline_mode<synchronous>, transform_indices = @transform_9, window_bounds = array<i64: 1, 128>}, {pipeline_mode = #tpu.pipeline_mode<synchronous>, transform_indices = @transform_10, window_bounds = array<i64: 1, 128>}, {pipeline_mode = #tpu.pipeline_mode<synchronous>, transform_indices = @transform_11, window_bounds = array<i64: 8, 128>}]} {
    %c0_i32 = arith.constant 0 : i32
    %0 = arith.cmpi eq, %arg0, %c0_i32 : i32
    %1 = arith.extui %0 : i1 to i32
    %c0_i32_0 = arith.constant 0 : i32
    %2 = arith.cmpi ne, %1, %c0_i32_0 : i32
    scf.if %2 {
      %c0_47 = arith.constant 0 : index
      %c0_48 = arith.constant 0 : index
      %127 = vector.load %arg1[%c0_47, %c0_48] : memref<8x128xf32, #tpu.memory_space<vmem>>, vector<8x128xf32>
      %c0_49 = arith.constant 0 : index
      %c0_50 = arith.constant 0 : index
      %128 = vector.load %arg13[%c0_49, %c0_50] : memref<8x128xf32, #tpu.memory_space<vmem>>, vector<8x128xf32>
      tpu.vector_store %arg13[%c0_49, %c0_50], %127 {strides = array<i32>} : memref<8x128xf32, #tpu.memory_space<vmem>>, vector<8x128xf32>,
    } else {
    }
    %c0 = arith.constant 0 : index
    %c0_1 = arith.constant 0 : index
    %3 = vector.load %arg13[%c0, %c0_1] : memref<8x128xf32, #tpu.memory_space<vmem>>, vector<8x128xf32>
    %c0_2 = arith.constant 0 : index
    %c0_3 = arith.constant 0 : index
    %c0_4 = arith.constant 0 : index
    %4 = vector.load %arg4[%c0_2, %c0_3, %c0_4] : memref<1x1x128xf32, #tpu.memory_space<vmem>>, vector<1x1x128xf32>
    %5 = vector.shape_cast %4 : vector<1x1x128xf32> to vector<1x128xf32>
    %c0_5 = arith.constant 0 : index
    %c0_6 = arith.constant 0 : index
    %c0_7 = arith.constant 0 : index
    %6 = vector.load %arg5[%c0_5, %c0_6, %c0_7] : memref<1x1x128xf32, #tpu.memory_space<vmem>>, vector<1x1x128xf32>
    %7 = vector.shape_cast %6 : vector<1x1x128xf32> to vector<1x128xf32>
    %cst = arith.constant dense<0.000000e+00> : vector<8xf32>
    %8 = vector.multi_reduction <add>, %3, %cst [1] : vector<8x128xf32> to vector<8xf32>
    %9 = vector.shape_cast %8 : vector<8xf32> to vector<8x1xf32>
    %cst_8 = arith.constant 1.280000e+02 : f32
    %10 = vector.broadcast %cst_8 : f32 to vector<8x1xf32>
    %11 = arith.divf %9, %10 : vector<8x1xf32>
    %12 = vector.broadcast %11 : vector<8x1xf32> to vector<8x128xf32>
    %13 = arith.subf %3, %12 : vector<8x128xf32>
    %14 = arith.mulf %13, %13 : vector<8x128xf32>
    %cst_9 = arith.constant dense<0.000000e+00> : vector<8xf32>
    %15 = vector.multi_reduction <add>, %14, %cst_9 [1] : vector<8x128xf32> to vector<8xf32>
    %16 = vector.shape_cast %15 : vector<8xf32> to vector<8x1xf32>
    %cst_10 = arith.constant 1.280000e+02 : f32
    %17 = vector.broadcast %cst_10 : f32 to vector<8x1xf32>
    %18 = arith.divf %16, %17 : vector<8x1xf32>
    %cst_11 = arith.constant 9.99999974E-6 : f32
    %19 = vector.broadcast %cst_11 : f32 to vector<8x1xf32>
    %20 = arith.addf %18, %19 : vector<8x1xf32>
    %21 = math.rsqrt %20 : vector<8x1xf32>
    %22 = vector.broadcast %21 : vector<8x1xf32> to vector<8x128xf32>
    %23 = arith.mulf %13, %22 : vector<8x128xf32>
    %24 = vector.broadcast %5 : vector<1x128xf32> to vector<8x128xf32>
    %25 = arith.mulf %23, %24 : vector<8x128xf32>
    %26 = vector.broadcast %7 : vector<1x128xf32> to vector<8x128xf32>
    %27 = arith.addf %25, %26 : vector<8x128xf32>
    %28 = arith.truncf %27 : vector<8x128xf32> to vector<8x128xbf16>
    %c0_12 = arith.constant 0 : index
    %c0_13 = arith.constant 0 : index
    %c0_14 = arith.constant 0 : index
    %29 = vector.load %arg6[%c0_12, %c0_13, %c0_14] : memref<1x128x256xbf16, #tpu.memory_space<vmem>>, vector<1x128x256xbf16>
    %30 = vector.shape_cast %29 : vector<1x128x256xbf16> to vector<128x256xbf16>
    %cst_15 = arith.constant dense<0.000000e+00> : vector<8x256xf32>
    %31 = tpu.matmul %28, %30, %cst_15 {dimension_numbers = #tpu.dot_dimension_numbers<[1], [0], [0], [1], [0, 0, 1, 1], [], []>} : vector<8x128xbf16>, vector<128x256xbf16>, vector<8x256xf32> -> vector<8x256xf32>
    %32 = vector.shape_cast %31 : vector<8x256xf32> to vector<8x8x32xf32>
    %33 = tpu.transpose %32, [1, 0, 2] : vector<8x8x32xf32> -> vector<8x8x32xf32>
    %34 = vector.extract_strided_slice %33 {offsets = [0, 0, 0], sizes = [4, 8, 32], strides = [1, 1, 1]} : vector<8x8x32xf32> to vector<4x8x32xf32>
    %35 = vector.extract_strided_slice %33 {offsets = [4, 0, 0], sizes = [2, 8, 32], strides = [1, 1, 1]} : vector<8x8x32xf32> to vector<2x8x32xf32>
    %36 = vector.extract_strided_slice %33 {offsets = [6, 0, 0], sizes = [2, 8, 32], strides = [1, 1, 1]} : vector<8x8x32xf32> to vector<2x8x32xf32>
    %c0_16 = arith.constant 0 : index
    %c0_17 = arith.constant 0 : index
    %37 = vector.load %arg2[%c0_16, %c0_17] : memref<8x32xf32, #tpu.memory_space<vmem>>, vector<8x32xf32>
    %38 = vector.shape_cast %37 : vector<8x32xf32> to vector<1x8x32xf32>
    %c0_18 = arith.constant 0 : index
    %c0_19 = arith.constant 0 : index
    %39 = vector.load %arg3[%c0_18, %c0_19] : memref<8x32xf32, #tpu.memory_space<vmem>>, vector<8x32xf32>
    %40 = vector.shape_cast %39 : vector<8x32xf32> to vector<1x8x32xf32>
    %41 = vector.extract_strided_slice %34 {offsets = [0, 0, 0], sizes = [4, 8, 16], strides = [1, 1, 1]} : vector<4x8x32xf32> to vector<4x8x16xf32>
    %42 = vector.extract_strided_slice %34 {offsets = [0, 0, 16], sizes = [4, 8, 16], strides = [1, 1, 1]} : vector<4x8x32xf32> to vector<4x8x16xf32>
    %cst_20 = arith.constant 0.000000e+00 : f32
    %43 = vector.broadcast %cst_20 : f32 to vector<4x8x16xf32>
    %44 = arith.subf %43, %42 : vector<4x8x16xf32>
    %45 = tpu.concatenate %44, %41 in 2 : vector<4x8x16xf32>, vector<4x8x16xf32> -> vector<4x8x32xf32>
    %46 = vector.broadcast %38 : vector<1x8x32xf32> to vector<4x8x32xf32>
    %47 = arith.mulf %34, %46 : vector<4x8x32xf32>
    %48 = vector.broadcast %40 : vector<1x8x32xf32> to vector<4x8x32xf32>
    %49 = arith.mulf %45, %48 : vector<4x8x32xf32>
    %50 = arith.addf %47, %49 : vector<4x8x32xf32>
    %cst_21 = arith.constant 0.176776692 : f32
    %51 = vector.broadcast %cst_21 : f32 to vector<4x8x32xf32>
    %52 = arith.mulf %50, %51 : vector<4x8x32xf32>
    %53 = arith.truncf %52 : vector<4x8x32xf32> to vector<4x8x32xbf16>
    %54 = vector.extract_strided_slice %35 {offsets = [0, 0, 0], sizes = [2, 8, 16], strides = [1, 1, 1]} : vector<2x8x32xf32> to vector<2x8x16xf32>
    %55 = vector.extract_strided_slice %35 {offsets = [0, 0, 16], sizes = [2, 8, 16], strides = [1, 1, 1]} : vector<2x8x32xf32> to vector<2x8x16xf32>
    %cst_22 = arith.constant 0.000000e+00 : f32
    %56 = vector.broadcast %cst_22 : f32 to vector<2x8x16xf32>
    %57 = arith.subf %56, %55 : vector<2x8x16xf32>
    %58 = tpu.concatenate %57, %54 in 2 : vector<2x8x16xf32>, vector<2x8x16xf32> -> vector<2x8x32xf32>
    %59 = vector.broadcast %38 : vector<1x8x32xf32> to vector<2x8x32xf32>
    %60 = arith.mulf %35, %59 : vector<2x8x32xf32>
    %61 = vector.broadcast %40 : vector<1x8x32xf32> to vector<2x8x32xf32>
    %62 = arith.mulf %58, %61 : vector<2x8x32xf32>
    %63 = arith.addf %60, %62 : vector<2x8x32xf32>
    %64 = arith.truncf %63 : vector<2x8x32xf32> to vector<2x8x32xbf16>
    %65 = arith.truncf %36 : vector<2x8x32xf32> to vector<2x8x32xbf16>
    %66 = vector.shape_cast %64 : vector<2x8x32xbf16> to vector<2x1x8x32xbf16>
    %67 = vector.shape_cast %66 : vector<2x1x8x32xbf16> to vector<2x1x8x32xbf16>
    %68 = vector.broadcast %67 : vector<2x1x8x32xbf16> to vector<2x2x8x32xbf16>
    %69 = vector.shape_cast %68 : vector<2x2x8x32xbf16> to vector<4x8x32xbf16>
    %70 = vector.shape_cast %65 : vector<2x8x32xbf16> to vector<2x1x8x32xbf16>
    %71 = vector.shape_cast %70 : vector<2x1x8x32xbf16> to vector<2x1x8x32xbf16>
    %72 = vector.broadcast %71 : vector<2x1x8x32xbf16> to vector<2x2x8x32xbf16>
    %73 = vector.shape_cast %72 : vector<2x2x8x32xbf16> to vector<4x8x32xbf16>
    "tpu.trace_start"() <{level = 10 : i32, message = "hqd,hkd->hqk"}> : () -> ()
    %cst_23 = arith.constant dense<0.000000e+00> : vector<4x8x8xf32>
    %74 = tpu.matmul %53, %69, %cst_23 {dimension_numbers = #tpu.dot_dimension_numbers<[2], [2], [1], [1], [0, 0, 0, 1, 1, 1], [0], [0]>} : vector<4x8x32xbf16>, vector<4x8x32xbf16>, vector<4x8x8xf32> -> vector<4x8x8xf32>
    "tpu.trace_stop"() : () -> ()
    %75 = tpu.iota {dimensions = array<i32: 0>} : vector<8x8xi32>
    %76 = tpu.iota {dimensions = array<i32: 1>} : vector<8x8xi32>
    %77 = arith.cmpi sle, %76, %75 : vector<8x8xi32>
    %78 = vector.shape_cast %77 : vector<8x8xi1> to vector<1x8x8xi1>
    %cst_24 = arith.constant -1.000000e+30 : f32
    %79 = vector.shape_cast %78 : vector<1x8x8xi1> to vector<1x8x8xi1>
    %80 = vector.broadcast %79 : vector<1x8x8xi1> to vector<4x8x8xi1>
    %81 = vector.broadcast %cst_24 : f32 to vector<4x8x8xf32>
    %82 = arith.select %80, %74, %81 : vector<4x8x8xi1>, vector<4x8x8xf32>
    %cst_25 = arith.constant dense<0xFF800000> : vector<4x8xf32>
    %83 = vector.multi_reduction <maximumf>, %82, %cst_25 [2] : vector<4x8x8xf32> to vector<4x8xf32>
    %84 = vector.shape_cast %83 : vector<4x8xf32> to vector<4x8x1xf32>
    %85 = vector.broadcast %84 : vector<4x8x1xf32> to vector<4x8x8xf32>
    %86 = arith.subf %82, %85 : vector<4x8x8xf32>
    %87 = math.exp %86 : vector<4x8x8xf32>
    %cst_26 = arith.constant dense<0.000000e+00> : vector<4x8xf32>
    %88 = vector.multi_reduction <add>, %87, %cst_26 [2] : vector<4x8x8xf32> to vector<4x8xf32>
    %89 = vector.shape_cast %88 : vector<4x8xf32> to vector<4x8x1xf32>
    %90 = tpu.reciprocal %89 {approx = true} : vector<4x8x1xf32> -> vector<4x8x1xf32>
    %91 = vector.broadcast %90 : vector<4x8x1xf32> to vector<4x8x8xf32>
    %92 = arith.mulf %87, %91 : vector<4x8x8xf32>
    %93 = arith.truncf %92 : vector<4x8x8xf32> to vector<4x8x8xbf16>
    "tpu.trace_start"() <{level = 10 : i32, message = "hqk,hkd->hqd"}> : () -> ()
    %cst_27 = arith.constant dense<0.000000e+00> : vector<4x8x32xf32>
    %94 = tpu.matmul %93, %73, %cst_27 {dimension_numbers = #tpu.dot_dimension_numbers<[2], [1], [1], [2], [0, 0, 0, 1, 1, 2], [0], [0]>} : vector<4x8x8xbf16>, vector<4x8x32xbf16>, vector<4x8x32xf32> -> vector<4x8x32xf32>
    "tpu.trace_stop"() : () -> ()
    %95 = tpu.transpose %94, [1, 0, 2] : vector<4x8x32xf32> -> vector<8x4x32xf32>
    %96 = vector.shape_cast %95 : vector<8x4x32xf32> to vector<8x128xf32>
    %97 = arith.truncf %96 : vector<8x128xf32> to vector<8x128xbf16>
    %c0_28 = arith.constant 0 : index
    %c0_29 = arith.constant 0 : index
    %c0_30 = arith.constant 0 : index
    %98 = vector.load %arg7[%c0_28, %c0_29, %c0_30] : memref<1x128x128xbf16, #tpu.memory_space<vmem>>, vector<1x128x128xbf16>
    %99 = vector.shape_cast %98 : vector<1x128x128xbf16> to vector<128x128xbf16>
    %cst_31 = arith.constant dense<0.000000e+00> : vector<8x128xf32>
    %100 = tpu.matmul %97, %99, %cst_31 {dimension_numbers = #tpu.dot_dimension_numbers<[1], [0], [0], [1], [0, 0, 1, 1], [], []>} : vector<8x128xbf16>, vector<128x128xbf16>, vector<8x128xf32> -> vector<8x128xf32>
    %c0_32 = arith.constant 0 : index
    %c0_33 = arith.constant 0 : index
    %c0_34 = arith.constant 0 : index
    %101 = vector.load %arg8[%c0_32, %c0_33, %c0_34] : memref<1x128x512xbf16, #tpu.memory_space<vmem>>, vector<1x128x512xbf16>
    %102 = vector.shape_cast %101 : vector<1x128x512xbf16> to vector<128x512xbf16>
    %cst_35 = arith.constant dense<0.000000e+00> : vector<8x512xf32>
    %103 = tpu.matmul %28, %102, %cst_35 {dimension_numbers = #tpu.dot_dimension_numbers<[1], [0], [0], [1], [0, 0, 1, 1], [], []>} : vector<8x128xbf16>, vector<128x512xbf16>, vector<8x512xf32> -> vector<8x512xf32>
    %cst_36 = arith.constant 5.000000e-01 : f32
    %104 = vector.broadcast %cst_36 : f32 to vector<8x512xf32>
    %105 = arith.mulf %104, %103 : vector<8x512xf32>
    %cst_37 = arith.constant 4.471500e-02 : f32
    %106 = vector.broadcast %cst_37 : f32 to vector<8x512xf32>
    %107 = arith.mulf %106, %103 : vector<8x512xf32>
    %108 = arith.mulf %107, %103 : vector<8x512xf32>
    %109 = arith.mulf %108, %103 : vector<8x512xf32>
    %110 = arith.addf %103, %109 : vector<8x512xf32>
    %cst_38 = arith.constant 0.797884583 : f32
    %111 = vector.broadcast %cst_38 : f32 to vector<8x512xf32>
    %112 = arith.mulf %111, %110 : vector<8x512xf32>
    %113 = math.tanh %112 : vector<8x512xf32>
    %cst_39 = arith.constant 1.000000e+00 : f32
    %114 = vector.broadcast %cst_39 : f32 to vector<8x512xf32>
    %115 = arith.addf %114, %113 : vector<8x512xf32>
    %116 = arith.mulf %105, %115 : vector<8x512xf32>
    %117 = arith.truncf %116 : vector<8x512xf32> to vector<8x512xbf16>
    %c0_40 = arith.constant 0 : index
    %c0_41 = arith.constant 0 : index
    %c0_42 = arith.constant 0 : index
    %118 = vector.load %arg9[%c0_40, %c0_41, %c0_42] : memref<1x512x128xbf16, #tpu.memory_space<vmem>>, vector<1x512x128xbf16>
    %119 = vector.shape_cast %118 : vector<1x512x128xbf16> to vector<512x128xbf16>
    %cst_43 = arith.constant dense<0.000000e+00> : vector<8x128xf32>
    %120 = tpu.matmul %117, %119, %cst_43 {dimension_numbers = #tpu.dot_dimension_numbers<[1], [0], [0], [1], [0, 0, 1, 1], [], []>} : vector<8x512xbf16>, vector<512x128xbf16>, vector<8x128xf32> -> vector<8x128xf32>
    %121 = arith.addf %120, %100 : vector<8x128xf32>
    %122 = arith.addf %121, %3 : vector<8x128xf32>
    %c0_44 = arith.constant 0 : index
    %c0_45 = arith.constant 0 : index
    %123 = vector.load %arg13[%c0_44, %c0_45] : memref<8x128xf32, #tpu.memory_space<vmem>>, vector<8x128xf32>
    tpu.vector_store %arg13[%c0_44, %c0_45], %122 {strides = array<i32>} : memref<8x128xf32, #tpu.memory_space<vmem>>, vector<8x128xf32>,
    %c1_i32 = arith.constant 1 : i32
    %124 = arith.cmpi eq, %arg0, %c1_i32 : i32
    %125 = arith.extui %124 : i1 to i32
    %c0_i32_46 = arith.constant 0 : i32
    %126 = arith.cmpi ne, %125, %c0_i32_46 : i32
    scf.if %126 {
      %c0_47 = arith.constant 0 : index
      %c0_48 = arith.constant 0 : index
      %127 = vector.load %arg13[%c0_47, %c0_48] : memref<8x128xf32, #tpu.memory_space<vmem>>, vector<8x128xf32>
      %c0_49 = arith.constant 0 : index
      %c0_50 = arith.constant 0 : index
      %128 = vector.load %arg10[%c0_49, %c0_50] : memref<1x128xf32, #tpu.memory_space<vmem>>, vector<1x128xf32>
      %c0_51 = arith.constant 0 : index
      %c0_52 = arith.constant 0 : index
      %129 = vector.load %arg11[%c0_51, %c0_52] : memref<1x128xf32, #tpu.memory_space<vmem>>, vector<1x128xf32>
      %cst_53 = arith.constant dense<0.000000e+00> : vector<8xf32>
      %130 = vector.multi_reduction <add>, %127, %cst_53 [1] : vector<8x128xf32> to vector<8xf32>
      %131 = vector.shape_cast %130 : vector<8xf32> to vector<8x1xf32>
      %cst_54 = arith.constant 1.280000e+02 : f32
      %132 = vector.broadcast %cst_54 : f32 to vector<8x1xf32>
      %133 = arith.divf %131, %132 : vector<8x1xf32>
      %134 = vector.broadcast %133 : vector<8x1xf32> to vector<8x128xf32>
      %135 = arith.subf %127, %134 : vector<8x128xf32>
      %136 = arith.mulf %135, %135 : vector<8x128xf32>
      %cst_55 = arith.constant dense<0.000000e+00> : vector<8xf32>
      %137 = vector.multi_reduction <add>, %136, %cst_55 [1] : vector<8x128xf32> to vector<8xf32>
      %138 = vector.shape_cast %137 : vector<8xf32> to vector<8x1xf32>
      %cst_56 = arith.constant 1.280000e+02 : f32
      %139 = vector.broadcast %cst_56 : f32 to vector<8x1xf32>
      %140 = arith.divf %138, %139 : vector<8x1xf32>
      %cst_57 = arith.constant 9.99999974E-6 : f32
      %141 = vector.broadcast %cst_57 : f32 to vector<8x1xf32>
      %142 = arith.addf %140, %141 : vector<8x1xf32>
      %143 = math.rsqrt %142 : vector<8x1xf32>
      %144 = vector.broadcast %143 : vector<8x1xf32> to vector<8x128xf32>
      %145 = arith.mulf %135, %144 : vector<8x128xf32>
      %146 = vector.broadcast %128 : vector<1x128xf32> to vector<8x128xf32>
      %147 = arith.mulf %145, %146 : vector<8x128xf32>
      %148 = vector.broadcast %129 : vector<1x128xf32> to vector<8x128xf32>
      %149 = arith.addf %147, %148 : vector<8x128xf32>
      %c0_58 = arith.constant 0 : index
      %c0_59 = arith.constant 0 : index
      %150 = vector.load %arg12[%c0_58, %c0_59] : memref<8x128xf32, #tpu.memory_space<vmem>>, vector<8x128xf32>
      tpu.vector_store %arg12[%c0_58, %c0_59], %149 {strides = array<i32>} : memref<8x128xf32, #tpu.memory_space<vmem>>, vector<8x128xf32>,
    } else {
    }
    return
  }
  func.func @transform_0(%arg0: i32) -> (i32, i32) {
    %c0_i32 = arith.constant 0 : i32
    %c0_i32_0 = arith.constant 0 : i32
    %c0_i32_1 = arith.constant 0 : i32
    return %c0_i32, %c0_i32_0 : i32, i32
  }
  func.func @transform_1(%arg0: i32) -> (i32, i32) {
    %c0_i32 = arith.constant 0 : i32
    %c0_i32_0 = arith.constant 0 : i32
    %c0_i32_1 = arith.constant 0 : i32
    return %c0_i32, %c0_i32_0 : i32, i32
  }
  func.func @transform_2(%arg0: i32) -> (i32, i32) {
    %c0_i32 = arith.constant 0 : i32
    %c0_i32_0 = arith.constant 0 : i32
    %c0_i32_1 = arith.constant 0 : i32
    return %c0_i32, %c0_i32_0 : i32, i32
  }
  func.func @transform_3(%arg0: i32) -> (i32, i32, i32) {
    %c0_i32 = arith.constant 0 : i32
    %c0_i32_0 = arith.constant 0 : i32
    %c0_i32_1 = arith.constant 0 : i32
    return %arg0, %c0_i32, %c0_i32_0 : i32, i32, i32
  }
  func.func @transform_4(%arg0: i32) -> (i32, i32, i32) {
    %c0_i32 = arith.constant 0 : i32
    %c0_i32_0 = arith.constant 0 : i32
    %c0_i32_1 = arith.constant 0 : i32
    return %arg0, %c0_i32, %c0_i32_0 : i32, i32, i32
  }
  func.func @transform_5(%arg0: i32) -> (i32, i32, i32) {
    %c0_i32 = arith.constant 0 : i32
    %c0_i32_0 = arith.constant 0 : i32
    %c0_i32_1 = arith.constant 0 : i32
    return %arg0, %c0_i32, %c0_i32_0 : i32, i32, i32
  }
  func.func @transform_6(%arg0: i32) -> (i32, i32, i32) {
    %c0_i32 = arith.constant 0 : i32
    %c0_i32_0 = arith.constant 0 : i32
    %c0_i32_1 = arith.constant 0 : i32
    return %arg0, %c0_i32, %c0_i32_0 : i32, i32, i32
  }
  func.func @transform_7(%arg0: i32) -> (i32, i32, i32) {
    %c0_i32 = arith.constant 0 : i32
    %c0_i32_0 = arith.constant 0 : i32
    %c0_i32_1 = arith.constant 0 : i32
    return %arg0, %c0_i32, %c0_i32_0 : i32, i32, i32
  }
  func.func @transform_8(%arg0: i32) -> (i32, i32, i32) {
    %c0_i32 = arith.constant 0 : i32
    %c0_i32_0 = arith.constant 0 : i32
    %c0_i32_1 = arith.constant 0 : i32
    return %arg0, %c0_i32, %c0_i32_0 : i32, i32, i32
  }
  func.func @transform_9(%arg0: i32) -> (i32, i32) {
    %c0_i32 = arith.constant 0 : i32
    %c0_i32_0 = arith.constant 0 : i32
    %c0_i32_1 = arith.constant 0 : i32
    return %c0_i32, %c0_i32_0 : i32, i32
  }
  func.func @transform_10(%arg0: i32) -> (i32, i32) {
    %c0_i32 = arith.constant 0 : i32
    %c0_i32_0 = arith.constant 0 : i32
    %c0_i32_1 = arith.constant 0 : i32
    return %c0_i32, %c0_i32_0 : i32, i32
  }
  func.func @transform_11(%arg0: i32) -> (i32, i32) {
    %c0_i32 = arith.constant 0 : i32
    %c0_i32_0 = arith.constant 0 : i32
    %c0_i32_1 = arith.constant 0 : i32
    return %c0_i32, %c0_i32_0 : i32, i32
  }
}

</mosaic_0001>

<llo_original>
// kernel: falcon_model_forward.1
$region0: #{falcon_model_forward.1}
  #allocation0 [shape = 'u32[]', space=smem, size = 0x4, offset = 0x4, fixed_abs, tag = 'smem constant byte address 0x4 - core index']
  #allocation1 [shape = 'u32[144,128]{1,0:T(1,128)}', space=vmem, size = 0x12000, scoped, tag = 'internal scratch']
  #allocation2 [shape = 'f32[8,128]{1,0:T(8,128)}', space=vmem, size = 0x1000, scoped, tag = 'scratch operand']
  %s0 = inlined_call_operand.vmem [shape: f32[8,128], index: 0, kind: input, shape index: {}]
  %s1 = inlined_call_operand.vmem [shape: f32[8,32], index: 1, kind: input, shape index: {}]
  %s2 = inlined_call_operand.vmem [shape: f32[8,32], index: 2, kind: input, shape index: {}]
  %s3 = inlined_call_operand.vmem [shape: f32[2,1,128], index: 3, kind: input, shape index: {}]
  %s4 = inlined_call_operand.vmem [shape: f32[2,1,128], index: 4, kind: input, shape index: {}]
  %s5 = inlined_call_operand.hbm [shape: bf16[2,128,256], index: 5, kind: input, shape index: {}]
  %s6 = inlined_call_operand.vmem [shape: bf16[2,128,128], index: 6, kind: input, shape index: {}]
  %s7 = inlined_call_operand.hbm [shape: bf16[2,128,512], index: 7, kind: input, shape index: {}]
  %s8 = inlined_call_operand.hbm [shape: bf16[2,512,128], index: 8, kind: input, shape index: {}]
  %s9 = inlined_call_operand.vmem [shape: f32[1,128], index: 9, kind: input, shape index: {}]
  %s10 = inlined_call_operand.vmem [shape: f32[1,128], index: 10, kind: input, shape index: {}]
  %s11 = inlined_call_operand.hbm [shape: f32[8,128], index: 11, kind: output, shape index: {}]
  %s12 = sld [smem:[#allocation0]]
  $region97: #{falcon_model_forward.1} parent=0
    _
  %s14 = ssub.s32 1, %s12
  %s15 = scalar_select 0, %s14, %s12
  $region1: #{falcon_model_forward.1} parent=0
    #allocation3 [shape = 'u8[131072]{0}', space=vmem, size = 0x20000, scoped, tag = 'input window, operand 5']
    #allocation4 [shape = 's32[2]{0}', space=sflag, size = 0x8, scoped, tag = 'scoped memory for falcon_model_forward.1']
    #allocation5 [shape = 's32[2]{0}', space=sflag, size = 0x8, scoped, tag = 'scoped memory for falcon_model_forward.1']
    #allocation6 [shape = 'u8[262144]{0}', space=vmem, size = 0x40000, scoped, tag = 'input window, operand 7']
    #allocation7 [shape = 's32[2]{0}', space=sflag, size = 0x8, scoped, tag = 'scoped memory for falcon_model_forward.1']
    #allocation8 [shape = 'u8[262144]{0}', space=vmem, size = 0x40000, scoped, tag = 'input window, operand 8']
    #allocation9 [shape = 'u8[4096]{0}', space=vmem, size = 0x1000, scoped, tag = 'output window, operand 0, single buffered']
    %16 = vsyncpa [#allocation4], 0
    %s17 = scalar_lea.sflag [#allocation4], 1
    %18 = vsyncpa %s17, 0
    %19 = vsyncpa [#allocation7], 0
    %s20 = scalar_lea.sflag [#allocation7], 1
    %21 = vsyncpa %s20, 0
    %22 = vsyncpa [#allocation5], 0
    loop: start=0, step=1, limit=4
    $region2: #{falcon_model_forward.1} parent=1 // loop_pre_header
      _
    $region3: #{falcon_model_forward.1} parent=1 // loop_header
      %s24 = sphi 0, %s28
      %p25 = scmp.ge.s32.totalorder %s24, 4
      %s32 = sphi 0, %s32
      %s34 = sphi 0, %s32
      %s35 = sphi 0, %s34
      %s49 = sphi 0, %s35
      %s53 = sphi 0, %s53
      %s55 = sphi 0, %s53
      %s56 = sphi 0, %s55
      %s70 = sphi 0, %s56
      %s74 = sphi 0, %s74
      %s76 = sphi 0, %s74
      %s77 = sphi 0, %s76
      %s91 = sphi 0, %s77
      %s97 = sphi 0, %s99
      %s100 = sphi 0, %s97
      %s101 = sphi 0, %s100
      %s117 = sphi 0, %s101
      %s123 = sphi 0, %s125
      %s126 = sphi 0, %s123
      %s127 = sphi 0, %s126
      %s143 = sphi 0, %s127
      %s149 = sphi 0, %s151
      %s152 = sphi 0, %s149
      %s153 = sphi 0, %s152
      %s169 = sphi 0, %s153
      %s175 = sphi 0, %s177
      %s178 = sphi 0, %s175
      %s179 = sphi 0, %s178
      %s195 = sphi 0, %s179
      %s201 = sphi 0, %s203
      %s204 = sphi 0, %s201
      %s205 = sphi 0, %s204
      %s221 = sphi 0, %s205
      %s227 = sphi 0, %s229
      %s230 = sphi 0, %s227
      %s231 = sphi 0, %s230
      %s247 = sphi 0, %s231
      %s251 = sphi 0, %s251
      %s253 = sphi 0, %s251
      %s254 = sphi 0, %s253
      %s268 = sphi 0, %s254
      %s272 = sphi 0, %s272
      %s274 = sphi 0, %s272
      %s275 = sphi 0, %s274
      %s289 = sphi 0, %s275
      %s293 = sphi 0, %s293
      %s295 = sphi 0, %s293
      %s296 = sphi 0, %s295
      %s310 = sphi 0, %s296
    $region4: #{falcon_model_forward.1} parent=1 // loop_header_branch
      %27 = sbr.rel (%p25) target = $region8
    $region5: #{falcon_model_forward.1} parent=1 // loop_body
      %s29 = ssub.s32 %s24, 1
      %s30 = ssub.s32 %s24, 2
      %s31 = sadd.s32 %s24, 1
      %s33 = sadd.s32 %s32, 1
      %p36 = scmp.eq.s32.totalorder %s24, 1
      %p37 = scmp.ne.s32.totalorder %s32, %s34
      %p38 = scmp.eq.s32.totalorder %s24, 0
      %p39 = por %p37, %p38
      %p40 = scmp.ne.s32.totalorder %s32, %s34
      %p41 = scmp.eq.s32.totalorder %s29, 1
      %p42 = por %p40, %p41
      %p43 = scmp.ne.s32.totalorder %s34, %s35
      %p44 = scmp.eq.s32.totalorder %s29, 0
      %p45 = por %p43, %p44
      %p46 = scmp.ne.s32.totalorder %s34, %s35
      %p47 = scmp.eq.s32.totalorder %s30, 1
      %p48 = por %p46, %p47
      %p50 = scmp.ne.s32.totalorder %s35, %s49
      %p51 = scmp.eq.s32.totalorder %s30, 0
      %p52 = por %p50, %p51
      %s54 = sadd.s32 %s53, 1
      %p57 = scmp.eq.s32.totalorder %s24, 1
      %p58 = scmp.ne.s32.totalorder %s53, %s55
      %p59 = scmp.eq.s32.totalorder %s24, 0
      %p60 = por %p58, %p59
      %p61 = scmp.ne.s32.totalorder %s53, %s55
      %p62 = scmp.eq.s32.totalorder %s29, 1
      %p63 = por %p61, %p62
      %p64 = scmp.ne.s32.totalorder %s55, %s56
      %p65 = scmp.eq.s32.totalorder %s29, 0
      %p66 = por %p64, %p65
      %p67 = scmp.ne.s32.totalorder %s55, %s56
      %p68 = scmp.eq.s32.totalorder %s30, 1
      %p69 = por %p67, %p68
      %p71 = scmp.ne.s32.totalorder %s56, %s70
      %p72 = scmp.eq.s32.totalorder %s30, 0
      %p73 = por %p71, %p72
      %s75 = sadd.s32 %s74, 1
      %p78 = scmp.eq.s32.totalorder %s24, 1
      %p79 = scmp.ne.s32.totalorder %s74, %s76
      %p80 = scmp.eq.s32.totalorder %s24, 0
      %p81 = por %p79, %p80
      %p82 = scmp.ne.s32.totalorder %s74, %s76
      %p83 = scmp.eq.s32.totalorder %s29, 1
      %p84 = por %p82, %p83
      %p85 = scmp.ne.s32.totalorder %s76, %s77
      %p86 = scmp.eq.s32.totalorder %s29, 0
      %p87 = por %p85, %p86
      %p88 = scmp.ne.s32.totalorder %s76, %s77
      %p89 = scmp.eq.s32.totalorder %s30, 1
      %p90 = por %p88, %p89
      %p92 = scmp.ne.s32.totalorder %s77, %s91
      %p93 = scmp.eq.s32.totalorder %s30, 0
      %p94 = por %p92, %p93
      %s95 = ssub.s32 %s24, %s31
      %p96 = scmp.eq.s32.totalorder %s95, 0
      %s98 = sadd.s32 %s97, 1
      %s99 = scalar_select %p96, %s97, %s98
      %p102 = pneg %p96
      %p103 = scmp.eq.s32.totalorder %s24, 1
      %p104 = por %p102, %p103
      %p105 = scmp.ne.s32.totalorder %s97, %s100
      %p106 = scmp.eq.s32.totalorder %s24, 0
      %p107 = por %p105, %p106
      %p108 = scmp.ne.s32.totalorder %s97, %s100
      %p109 = scmp.eq.s32.totalorder %s29, 1
      %p110 = por %p108, %p109
      %p111 = scmp.ne.s32.totalorder %s100, %s101
      %p112 = scmp.eq.s32.totalorder %s29, 0
      %p113 = por %p111, %p112
      %p114 = scmp.ne.s32.totalorder %s100, %s101
      %p115 = scmp.eq.s32.totalorder %s30, 1
      %p116 = por %p114, %p115
      %p118 = scmp.ne.s32.totalorder %s101, %s117
      %p119 = scmp.eq.s32.totalorder %s30, 0
      %p120 = por %p118, %p119
      %s121 = ssub.s32 %s24, %s31
      %p122 = scmp.eq.s32.totalorder %s121, 0
      %s124 = sadd.s32 %s123, 1
      %s125 = scalar_select %p122, %s123, %s124
      %p128 = pneg %p122
      %p129 = scmp.eq.s32.totalorder %s24, 1
      %p130 = por %p128, %p129
      %p131 = scmp.ne.s32.totalorder %s123, %s126
      %p132 = scmp.eq.s32.totalorder %s24, 0
      %p133 = por %p131, %p132
      %p134 = scmp.ne.s32.totalorder %s123, %s126
      %p135 = scmp.eq.s32.totalorder %s29, 1
      %p136 = por %p134, %p135
      %p137 = scmp.ne.s32.totalorder %s126, %s127
      %p138 = scmp.eq.s32.totalorder %s29, 0
      %p139 = por %p137, %p138
      %p140 = scmp.ne.s32.totalorder %s126, %s127
      %p141 = scmp.eq.s32.totalorder %s30, 1
      %p142 = por %p140, %p141
      %p144 = scmp.ne.s32.totalorder %s127, %s143
      %p145 = scmp.eq.s32.totalorder %s30, 0
      %p146 = por %p144, %p145
      %s147 = ssub.s32 %s24, %s31
      %p148 = scmp.eq.s32.totalorder %s147, 0
      %s150 = sadd.s32 %s149, 1
      %s151 = scalar_select %p148, %s149, %s150
      %p154 = pneg %p148
      %p155 = scmp.eq.s32.totalorder %s24, 1
      %p156 = por %p154, %p155
      %p157 = scmp.ne.s32.totalorder %s149, %s152
      %p158 = scmp.eq.s32.totalorder %s24, 0
      %p159 = por %p157, %p158
      %p160 = scmp.ne.s32.totalorder %s149, %s152
      %p161 = scmp.eq.s32.totalorder %s29, 1
      %p162 = por %p160, %p161
      %p163 = scmp.ne.s32.totalorder %s152, %s153
      %p164 = scmp.eq.s32.totalorder %s29, 0
      %p165 = por %p163, %p164
      %p166 = scmp.ne.s32.totalorder %s152, %s153
      %p167 = scmp.eq.s32.totalorder %s30, 1
      %p168 = por %p166, %p167
      %p170 = scmp.ne.s32.totalorder %s153, %s169
      %p171 = scmp.eq.s32.totalorder %s30, 0
      %p172 = por %p170, %p171
      %s173 = ssub.s32 %s24, %s31
      %p174 = scmp.eq.s32.totalorder %s173, 0
      %s176 = sadd.s32 %s175, 1
      %s177 = scalar_select %p174, %s175, %s176
      %p180 = pneg %p174
      %p181 = scmp.eq.s32.totalorder %s24, 1
      %p182 = por %p180, %p181
      %p183 = scmp.ne.s32.totalorder %s175, %s178
      %p184 = scmp.eq.s32.totalorder %s24, 0
      %p185 = por %p183, %p184
      %p186 = scmp.ne.s32.totalorder %s175, %s178
      %p187 = scmp.eq.s32.totalorder %s29, 1
      %p188 = por %p186, %p187
      %p189 = scmp.ne.s32.totalorder %s178, %s179
      %p190 = scmp.eq.s32.totalorder %s29, 0
      %p191 = por %p189, %p190
      %p192 = scmp.ne.s32.totalorder %s178, %s179
      %p193 = scmp.eq.s32.totalorder %s30, 1
      %p194 = por %p192, %p193
      %p196 = scmp.ne.s32.totalorder %s179, %s195
      %p197 = scmp.eq.s32.totalorder %s30, 0
      %p198 = por %p196, %p197
      %s199 = ssub.s32 %s24, %s31
      %p200 = scmp.eq.s32.totalorder %s199, 0
      %s202 = sadd.s32 %s201, 1
      %s203 = scalar_select %p200, %s201, %s202
      %p206 = pneg %p200
      %p207 = scmp.eq.s32.totalorder %s24, 1
      %p208 = por %p206, %p207
      %p209 = scmp.ne.s32.totalorder %s201, %s204
      %p210 = scmp.eq.s32.totalorder %s24, 0
      %p211 = por %p209, %p210
      %p212 = scmp.ne.s32.totalorder %s201, %s204
      %p213 = scmp.eq.s32.totalorder %s29, 1
      %p214 = por %p212, %p213
      %p215 = scmp.ne.s32.totalorder %s204, %s205
      %p216 = scmp.eq.s32.totalorder %s29, 0
      %p217 = por %p215, %p216
      %p218 = scmp.ne.s32.totalorder %s204, %s205
      %p219 = scmp.eq.s32.totalorder %s30, 1
      %p220 = por %p218, %p219
      %p222 = scmp.ne.s32.totalorder %s205, %s221
      %p223 = scmp.eq.s32.totalorder %s30, 0
      %p224 = por %p222, %p223
      %s225 = ssub.s32 %s24, %s31
      %p226 = scmp.eq.s32.totalorder %s225, 0
      %s228 = sadd.s32 %s227, 1
      %s229 = scalar_select %p226, %s227, %s228
      %p232 = pneg %p226
      %p233 = scmp.eq.s32.totalorder %s24, 1
      %p234 = por %p232, %p233
      %p235 = scmp.ne.s32.totalorder %s227, %s230
      %p236 = scmp.eq.s32.totalorder %s24, 0
      %p237 = por %p235, %p236
      %p238 = scmp.ne.s32.totalorder %s227, %s230
      %p239 = scmp.eq.s32.totalorder %s29, 1
      %p240 = por %p238, %p239
      %p241 = scmp.ne.s32.totalorder %s230, %s231
      %p242 = scmp.eq.s32.totalorder %s29, 0
      %p243 = por %p241, %p242
      %p244 = scmp.ne.s32.totalorder %s230, %s231
      %p245 = scmp.eq.s32.totalorder %s30, 1
      %p246 = por %p244, %p245
      %p248 = scmp.ne.s32.totalorder %s231, %s247
      %p249 = scmp.eq.s32.totalorder %s30, 0
      %p250 = por %p248, %p249
      %s252 = sadd.s32 %s251, 1
      %p255 = scmp.eq.s32.totalorder %s24, 1
      %p256 = scmp.ne.s32.totalorder %s251, %s253
      %p257 = scmp.eq.s32.totalorder %s24, 0
      %p258 = por %p256, %p257
      %p259 = scmp.ne.s32.totalorder %s251, %s253
      %p260 = scmp.eq.s32.totalorder %s29, 1
      %p261 = por %p259, %p260
      %p262 = scmp.ne.s32.totalorder %s253, %s254
      %p263 = scmp.eq.s32.totalorder %s29, 0
      %p264 = por %p262, %p263
      %p265 = scmp.ne.s32.totalorder %s253, %s254
      %p266 = scmp.eq.s32.totalorder %s30, 1
      %p267 = por %p265, %p266
      %p269 = scmp.ne.s32.totalorder %s254, %s268
      %p270 = scmp.eq.s32.totalorder %s30, 0
      %p271 = por %p269, %p270
      %s273 = sadd.s32 %s272, 1
      %p276 = scmp.eq.s32.totalorder %s24, 1
      %p277 = scmp.ne.s32.totalorder %s272, %s274
      %p278 = scmp.eq.s32.totalorder %s24, 0
      %p279 = por %p277, %p278
      %p280 = scmp.ne.s32.totalorder %s272, %s274
      %p281 = scmp.eq.s32.totalorder %s29, 1
      %p282 = por %p280, %p281
      %p283 = scmp.ne.s32.totalorder %s274, %s275
      %p284 = scmp.eq.s32.totalorder %s29, 0
      %p285 = por %p283, %p284
      %p286 = scmp.ne.s32.totalorder %s274, %s275
      %p287 = scmp.eq.s32.totalorder %s30, 1
      %p288 = por %p286, %p287
      %p290 = scmp.ne.s32.totalorder %s275, %s289
      %p291 = scmp.eq.s32.totalorder %s30, 0
      %p292 = por %p290, %p291
      %s294 = sadd.s32 %s293, 1
      %p297 = scmp.eq.s32.totalorder %s24, 1
      %p298 = scmp.ne.s32.totalorder %s293, %s295
      %p299 = scmp.eq.s32.totalorder %s24, 0
      %p300 = por %p298, %p299
      %p301 = scmp.ne.s32.totalorder %s293, %s295
      %p302 = scmp.eq.s32.totalorder %s29, 1
      %p303 = por %p301, %p302
      %p304 = scmp.ne.s32.totalorder %s295, %s296
      %p305 = scmp.eq.s32.totalorder %s29, 0
      %p306 = por %p304, %p305
      %p307 = scmp.ne.s32.totalorder %s295, %s296
      %p308 = scmp.eq.s32.totalorder %s30, 1
      %p309 = por %p307, %p308
      %p311 = scmp.ne.s32.totalorder %s296, %s310
      %p312 = scmp.eq.s32.totalorder %s30, 0
      %p313 = por %p311, %p312
      %p314 = scmp.le.s32.totalorder 1, %s24
      %p315 = scmp.lt.s32.totalorder %s24, 3
      %p316 = pnand %p314, %p315
      %p317 = pneg %p316
      // Predicated region
      $region9: #{falcon_model_forward.1} parent=5 // pred_check
        _
      $region10: #{falcon_model_forward.1} parent=5 // pred_check_branch
        %319 = sbr.rel (%p316) target = $region12
      $region11: #{falcon_model_forward.1} parent=5 // pred_region
        %s320 = ssub.s32 %s24, 1
        // Predicated region
        $region13: #{falcon_model_forward.1} parent=11 // pred_check
          %p321 = pneg %p45
        $region14: #{falcon_model_forward.1} parent=11 // pred_check_branch
          %323 = sbr.rel (%p321) target = $region16
        $region15: #{falcon_model_forward.1} parent=11 // pred_region
          _
        $region16: #{falcon_model_forward.1} parent=11 // pred_fallthru
          _
        // Predicated region
        $region17: #{falcon_model_forward.1} parent=11 // pred_check
          %p324 = pneg %p66
        $region18: #{falcon_model_forward.1} parent=11 // pred_check_branch
          %326 = sbr.rel (%p324) target = $region20
        $region19: #{falcon_model_forward.1} parent=11 // pred_region
          _
        $region20: #{falcon_model_forward.1} parent=11 // pred_fallthru
          _
        // Predicated region
        $region21: #{falcon_model_forward.1} parent=11 // pred_check
          %p327 = pneg %p87
        $region22: #{falcon_model_forward.1} parent=11 // pred_check_branch
          %329 = sbr.rel (%p327) target = $region24
        $region23: #{falcon_model_forward.1} parent=11 // pred_region
          _
        $region24: #{falcon_model_forward.1} parent=11 // pred_fallthru
          _
        // Predicated region
        $region25: #{falcon_model_forward.1} parent=11 // pred_check
          %p330 = pneg %p264
        $region26: #{falcon_model_forward.1} parent=11 // pred_check_branch
          %332 = sbr.rel (%p330) target = $region28
        $region27: #{falcon_model_forward.1} parent=11 // pred_region
          _
        $region28: #{falcon_model_forward.1} parent=11 // pred_fallthru
          _
        // Predicated region
        $region29: #{falcon_model_forward.1} parent=11 // pred_check
          %p333 = pneg %p285
        $region30: #{falcon_model_forward.1} parent=11 // pred_check_branch
          %335 = sbr.rel (%p333) target = $region32
        $region31: #{falcon_model_forward.1} parent=11 // pred_region
          _
        $region32: #{falcon_model_forward.1} parent=11 // pred_fallthru
          _
      $region12: #{falcon_model_forward.1} parent=5 // pred_fallthru
        _
      %p336 = scmp.lt.s32.totalorder %s24, 2
      // Predicated region
      $region33: #{falcon_model_forward.1} parent=5 // pred_check
        %p337 = pneg %p336
      $region34: #{falcon_model_forward.1} parent=5 // pred_check_branch
        %339 = sbr.rel (%p337) target = $region36
      $region35: #{falcon_model_forward.1} parent=5 // pred_region
        // Predicated region
        $region37: #{falcon_model_forward.1} parent=35 // pred_check
          %p340 = pneg %p107
        $region38: #{falcon_model_forward.1} parent=35 // pred_check_branch
          %342 = sbr.rel (%p340) target = $region40
        $region39: #{falcon_model_forward.1} parent=35 // pred_region
          %p343 = scmp.lt.s32.totalorder %s24, 1
          %s344 = scalar_select %p343, %s24, 1
          %s345 = scalar_lea.vmem %s3, %s344
        $region40: #{falcon_model_forward.1} parent=35 // pred_fallthru
          _
        // Predicated region
        $region41: #{falcon_model_forward.1} parent=35 // pred_check
          %p346 = pneg %p133
        $region42: #{falcon_model_forward.1} parent=35 // pred_check_branch
          %348 = sbr.rel (%p346) target = $region44
        $region43: #{falcon_model_forward.1} parent=35 // pred_region
          %p349 = scmp.lt.s32.totalorder %s24, 1
          %s350 = scalar_select %p349, %s24, 1
          %s351 = scalar_lea.vmem %s4, %s350
        $region44: #{falcon_model_forward.1} parent=35 // pred_fallthru
          _
        // Predicated region
        $region45: #{falcon_model_forward.1} parent=35 // pred_check
          %p352 = pneg %p159
        $region46: #{falcon_model_forward.1} parent=35 // pred_check_branch
          %354 = sbr.rel (%p352) target = $region48
        $region47: #{falcon_model_forward.1} parent=35 // pred_region
          %s355 = sand.u32 %s149, 1
          %s356 = scalar_lea.sflag [#allocation4], %s355
          %s357 = sand.u32 %s149, 1
          %s358 = smul.addr %s357, 128
          %s359 = scalar_lea.vmem [#allocation3], %s358
          %s361 = ssub.s32 2048, 2048
          %362 = vsyncadd %s356, %s361
          %s363 = smul.addr %s24, 32
          %s364 = smul.addr %s363, 64
          %s365 = scalar_lea.hbm %s5, %s364
          %s366 = sshll.u32 %s359, 4
          %s367 = int_to_ptr.vmem [resolvable:$true] %s366
          %372 = dma.hbm_to_vmem [thread:$0]  %s365, 2048, %s367, %s356, 128, 128, 8
        $region48: #{falcon_model_forward.1} parent=35 // pred_fallthru
          _
        // Predicated region
        $region49: #{falcon_model_forward.1} parent=35 // pred_check
          %p373 = pneg %p185
        $region50: #{falcon_model_forward.1} parent=35 // pred_check_branch
          %375 = sbr.rel (%p373) target = $region52
        $region51: #{falcon_model_forward.1} parent=35 // pred_region
          %p376 = scmp.lt.s32.totalorder %s24, 1
          %s377 = scalar_select %p376, %s24, 1
          %s378 = smul.addr %s377, 16
          %s379 = smul.addr %s378, 4
          %s380 = scalar_lea.vmem %s6, %s379
        $region52: #{falcon_model_forward.1} parent=35 // pred_fallthru
          _
        // Predicated region
        $region53: #{falcon_model_forward.1} parent=35 // pred_check
          %p381 = pneg %p211
        $region54: #{falcon_model_forward.1} parent=35 // pred_check_branch
          %383 = sbr.rel (%p381) target = $region56
        $region55: #{falcon_model_forward.1} parent=35 // pred_region
          %s384 = sand.u32 %s24, 1
          %s385 = scalar_lea.sflag [#allocation7], %s384
          %s386 = sand.u32 %s201, 1
          %s387 = smul.addr %s386, 256
          %s388 = scalar_lea.vmem [#allocation6], %s387
          %s390 = ssub.s32 4096, 4096
          %391 = vsyncadd %s385, %s390
          %s392 = smul.addr %s24, 64
          %s393 = smul.addr %s392, 64
          %s394 = scalar_lea.hbm %s7, %s393
          %s395 = sshll.u32 %s388, 4
          %s396 = int_to_ptr.vmem [resolvable:$true] %s395
          %401 = dma.hbm_to_vmem [thread:$0]  %s394, 4096, %s396, %s385, 256, 256, 16
        $region56: #{falcon_model_forward.1} parent=35 // pred_fallthru
          _
        // Predicated region
        $region57: #{falcon_model_forward.1} parent=35 // pred_check
          %p402 = pneg %p237
        $region58: #{falcon_model_forward.1} parent=35 // pred_check_branch
          %404 = sbr.rel (%p402) target = $region60
        $region59: #{falcon_model_forward.1} parent=35 // pred_region
          %s405 = sand.u32 %s24, 1
          %s406 = scalar_lea.sflag [#allocation7], %s405
          %s407 = sand.u32 %s227, 1
          %s408 = smul.addr %s407, 256
          %s409 = scalar_lea.vmem [#allocation8], %s408
          %s411 = ssub.s32 4096, 4096
          %412 = vsyncadd %s406, %s411
          %s413 = smul.addr %s24, 64
          %s414 = smul.addr %s413, 64
          %s415 = scalar_lea.hbm %s8, %s414
          %s416 = sshll.u32 %s409, 4
          %s417 = int_to_ptr.vmem [resolvable:$true] %s416
          %422 = dma.hbm_to_vmem [thread:$0]  %s415, 4096, %s417, %s406, 64, 64, 4
        $region60: #{falcon_model_forward.1} parent=35 // pred_fallthru
          _
      $region36: #{falcon_model_forward.1} parent=5 // pred_fallthru
        _
      %p423 = scmp.le.s32.totalorder 1, %s24
      %p424 = scmp.lt.s32.totalorder %s24, 3
      %p425 = pnand %p423, %p424
      %p426 = pneg %p425
      // Predicated region
      $region61: #{falcon_model_forward.1} parent=5 // pred_check
        _
      $region62: #{falcon_model_forward.1} parent=5 // pred_check_branch
        %428 = sbr.rel (%p425) target = $region64
      $region63: #{falcon_model_forward.1} parent=5 // pred_region
        %s429 = ssub.s32 %s24, 1
        %s430 = sand.u32 %s152, 1
        %s431 = scalar_lea.sflag [#allocation4], %s430
        %s432 = sand.u32 %s152, 1
        %s433 = smul.addr %s432, 128
        %s434 = scalar_lea.vmem [#allocation3], %s433
        // Predicated region
        $region65: #{falcon_model_forward.1} parent=63 // pred_check
          %p435 = pneg %p165
        $region66: #{falcon_model_forward.1} parent=63 // pred_check_branch
          %437 = sbr.rel (%p435) target = $region68
        $region67: #{falcon_model_forward.1} parent=63 // pred_region
          %438 = dma.done %s431, 2048
        $region68: #{falcon_model_forward.1} parent=63 // pred_fallthru
          _
        %s439 = sand.u32 %s29, 1
        %s440 = scalar_lea.sflag [#allocation7], %s439
        %s441 = sand.u32 %s204, 1
        %s442 = smul.addr %s441, 256
        %s443 = scalar_lea.vmem [#allocation6], %s442
        // Predicated region
        $region69: #{falcon_model_forward.1} parent=63 // pred_check
          %p444 = pneg %p217
        $region70: #{falcon_model_forward.1} parent=63 // pred_check_branch
          %446 = sbr.rel (%p444) target = $region72
        $region71: #{falcon_model_forward.1} parent=63 // pred_region
          %447 = dma.done %s440, 4096
        $region72: #{falcon_model_forward.1} parent=63 // pred_fallthru
          _
        %s448 = sand.u32 %s29, 1
        %s449 = scalar_lea.sflag [#allocation7], %s448
        %s450 = sand.u32 %s230, 1
        %s451 = smul.addr %s450, 256
        %s452 = scalar_lea.vmem [#allocation8], %s451
        // Predicated region
        $region73: #{falcon_model_forward.1} parent=63 // pred_check
          %p453 = pneg %p243
        $region74: #{falcon_model_forward.1} parent=63 // pred_check_branch
          %455 = sbr.rel (%p453) target = $region76
        $region75: #{falcon_model_forward.1} parent=63 // pred_region
          %456 = dma.done %s449, 4096
        $region76: #{falcon_model_forward.1} parent=63 // pred_fallthru
          _
        %p457 = pneg %p45
        %p458 = pneg %p42
        %p459 = pneg %p66
        %p460 = pneg %p63
        %p461 = pneg %p87
        %p462 = pneg %p84
        %p463 = scmp.lt.s32.totalorder %s29, 1
        %s464 = scalar_select %p463, %s29, 1
        %s465 = scalar_lea.vmem %s3, %s464
        %p466 = pneg %p113
        %p467 = pneg %p110
        %p468 = scmp.lt.s32.totalorder %s29, 1
        %s469 = scalar_select %p468, %s29, 1
        %s470 = scalar_lea.vmem %s4, %s469
        %p471 = pneg %p139
        %p472 = pneg %p136
        %s473 = sand.u32 %s152, 1
        %s474 = scalar_lea.sflag [#allocation4], %s473
        %s475 = sand.u32 %s152, 1
        %s476 = smul.addr %s475, 128
        %s477 = scalar_lea.vmem [#allocation3], %s476
        %p478 = pneg %p165
        %p479 = pneg %p162
        %p480 = scmp.lt.s32.totalorder %s29, 1
        %s481 = scalar_select %p480, %s29, 1
        %s482 = smul.addr %s481, 16
        %s483 = smul.addr %s482, 4
        %s484 = scalar_lea.vmem %s6, %s483
        %p485 = pneg %p191
        %p486 = pneg %p188
        %s487 = sand.u32 %s29, 1
        %s488 = scalar_lea.sflag [#allocation7], %s487
        %s489 = sand.u32 %s204, 1
        %s490 = smul.addr %s489, 256
        %s491 = scalar_lea.vmem [#allocation6], %s490
        %p492 = pneg %p217
        %p493 = pneg %p214
        %s494 = sand.u32 %s29, 1
        %s495 = scalar_lea.sflag [#allocation7], %s494
        %s496 = sand.u32 %s230, 1
        %s497 = smul.addr %s496, 256
        %s498 = scalar_lea.vmem [#allocation8], %s497
        %p499 = pneg %p243
        %p500 = pneg %p240
        %p501 = pneg %p264
        %p502 = pneg %p261
        %p503 = pneg %p285
        %p504 = pneg %p282
        %p505 = pneg %p306
        %p506 = pneg %p303
        %p507 = scmp.lt.s32.totalorder %s29, 1
        %s508 = scalar_select %p507, %s29, 1
        %s509 = scalar_lea.vmem %s3, %s508
        %p510 = scmp.lt.s32.totalorder %s29, 1
        %s511 = scalar_select %p510, %s29, 1
        %s512 = scalar_lea.vmem %s4, %s511
        %p513 = scmp.lt.s32.totalorder %s29, 1
        %s514 = scalar_select %p513, %s29, 1
        %s515 = smul.addr %s514, 16
        %s516 = smul.addr %s515, 4
        %s517 = scalar_lea.vmem %s6, %s516
        %p519 = scmp.eq.s32.totalorder %s29, 0
        // Predicated region
        $region77: #{falcon_model_forward.1} parent=63 // pred_check
          %p520 = pneg %p519
        $region78: #{falcon_model_forward.1} parent=63 // pred_check_branch
          %522 = sbr.rel (%p520) target = $region80
        $region79: #{falcon_model_forward.1} parent=63 // pred_region
          %v523 = vld [vmem:[%s0] sm:$0xff]
          %524 = vst [vmem:[#allocation2] sm:$0xff] %v523
        $region80: #{falcon_model_forward.1} parent=63 // pred_fallthru
          _
        %v525 = vld [vmem:[#allocation2] sm:$0xff]
        %v526 = vld [vmem:[%s509] sm:$0x1]
        %v527 = vld [vmem:[%s512] sm:$0x1]
        %528 = vadd.xlane.f32.xlu0 %v525
        %v529 = vpop.xlane.xlu0 %528
        %v530 = vrcp.pop 128.0
        %v531 = vmul.f32 %v529, %v530
        %v532 = vsub.f32 %v525, %v531
        %v533 = vmul.f32 %v532, %v532
        %534 = vadd.xlane.f32.xlu0 %v533
        %v535 = vpop.xlane.xlu0 %534
        %v536 = vmul.f32 %v535, %v530
        %v537 = vadd.f32 %v536, 1e-05
        %v538 = vrsqrt.pop %v537
        %v539 = vmul.f32 %v532, %v538
        %v541 = vlaneseq
        %v542 = vshrl.u32 %v541, 7
        %v543 = vsub.s32 0, %v542
        %v544 = vrot.slane %v526, %v543
        %v546 = vmul.f32 %v539, %v544
        %v548 = vlaneseq
        %v549 = vshrl.u32 %v548, 7
        %v550 = vsub.s32 0, %v549
        %v551 = vrot.slane %v527, %v550
        %v553 = vadd.f32 %v546, %v551
        %v554 = vpack.c.bf16 %v553, %v553
        %v555 = vld [vmem:[%s434] sm:$0xff]
        %v556 = vld [vmem:[%s434 + $0x8] sm:$0xff]
        %v557 = vld [vmem:[%s434 + $0x10] sm:$0xff]
        %v558 = vld [vmem:[%s434 + $0x18] sm:$0xff]
        %v559 = vld [vmem:[%s434 + $0x20] sm:$0xff]
        %v560 = vld [vmem:[%s434 + $0x28] sm:$0xff]
        %v561 = vld [vmem:[%s434 + $0x30] sm:$0xff]
        %v562 = vld [vmem:[%s434 + $0x38] sm:$0xff]
        %v563 = vld [vmem:[%s434 + $0x40] sm:$0xff]
        %v564 = vld [vmem:[%s434 + $0x48] sm:$0xff]
        %v565 = vld [vmem:[%s434 + $0x50] sm:$0xff]
        %v566 = vld [vmem:[%s434 + $0x58] sm:$0xff]
        %v567 = vld [vmem:[%s434 + $0x60] sm:$0xff]
        %v568 = vld [vmem:[%s434 + $0x68] sm:$0xff]
        %v569 = vld [vmem:[%s434 + $0x70] sm:$0xff]
        %v570 = vld [vmem:[%s434 + $0x78] sm:$0xff]
        %v587 = vunpack.c.l.b16 %v555
        %v588 = vunpack.c.h.b16 %v555
        %v589 = vunpack.c.l.b16 %v556
        %v590 = vunpack.c.h.b16 %v556
        %v591 = vunpack.c.l.b16 %v557
        %v592 = vunpack.c.h.b16 %v557
        %v593 = vunpack.c.l.b16 %v558
        %v594 = vunpack.c.h.b16 %v558
        %v595 = vunpack.c.l.b16 %v559
        %v596 = vunpack.c.h.b16 %v559
        %v597 = vunpack.c.l.b16 %v560
        %v598 = vunpack.c.h.b16 %v560
        %v599 = vunpack.c.l.b16 %v561
        %v600 = vunpack.c.h.b16 %v561
        %v601 = vunpack.c.l.b16 %v562
        %v602 = vunpack.c.h.b16 %v562
        %v603 = vunpack.c.l.b16 %v563
        %v604 = vunpack.c.h.b16 %v563
        %v605 = vunpack.c.l.b16 %v564
        %v606 = vunpack.c.h.b16 %v564
        %v607 = vunpack.c.l.b16 %v565
        %v608 = vunpack.c.h.b16 %v565
        %v609 = vunpack.c.l.b16 %v566
        %v610 = vunpack.c.h.b16 %v566
        %v611 = vunpack.c.l.b16 %v567
        %v612 = vunpack.c.h.b16 %v567
        %v613 = vunpack.c.l.b16 %v568
        %v614 = vunpack.c.h.b16 %v568
        %v615 = vunpack.c.l.b16 %v569
        %v616 = vunpack.c.h.b16 %v569
        %v617 = vunpack.c.l.b16 %v570
        %v618 = vunpack.c.h.b16 %v570
        %v619 = vpack.c.b16 %v589, %v587
        %v620 = vpack.c.b16 %v590, %v588
        %v621 = vpack.c.b16 %v593, %v591
        %v622 = vpack.c.b16 %v594, %v592
        %v623 = vpack.c.b16 %v597, %v595
        %v624 = vpack.c.b16 %v598, %v596
        %v625 = vpack.c.b16 %v601, %v599
        %v626 = vpack.c.b16 %v602, %v600
        %v627 = vpack.c.b16 %v605, %v603
        %v628 = vpack.c.b16 %v606, %v604
        %v629 = vpack.c.b16 %v609, %v607
        %v630 = vpack.c.b16 %v610, %v608
        %v631 = vpack.c.b16 %v613, %v611
        %v632 = vpack.c.b16 %v614, %v612
        %v633 = vpack.c.b16 %v617, %v615
        %v634 = vpack.c.b16 %v618, %v616
        %651 = vmatprep.subr.bf16.mxu0 %v620
        %652 = vmatpush1.bf16.msra.mxu0 %v619
        %653 = vmatprep.subr.bf16.mxu0 %v622
        %654 = vmatpush1.bf16.msra.mxu0 %v621
        %655 = vmatprep.subr.bf16.mxu0 %v624
        %656 = vmatpush1.bf16.msra.mxu0 %v623
        %657 = vmatprep.subr.bf16.mxu0 %v626
        %658 = vmatpush1.bf16.msra.mxu0 %v625
        %659 = vmatprep.subr.bf16.mxu0 %v628
        %660 = vmatpush1.bf16.msra.mxu0 %v627
        %661 = vmatprep.subr.bf16.mxu0 %v630
        %662 = vmatpush1.bf16.msra.mxu0 %v629
        %663 = vmatprep.subr.bf16.mxu0 %v632
        %664 = vmatpush1.bf16.msra.mxu0 %v631
        %665 = vmatprep.subr.bf16.mxu0 %v634
        %666 = vmatpush1.bf16.msra.mxu0 %v633
        %667 = vmatprep.subr.bf16.mxu0 0
        %668 = vmatpush1.bf16.msra.mxu0 0
        %669 = vmatprep.subr.bf16.mxu0 0
        %670 = vmatpush1.bf16.msra.mxu0 0
        %671 = vmatprep.subr.bf16.mxu0 0
        %672 = vmatpush1.bf16.msra.mxu0 0
        %673 = vmatprep.subr.bf16.mxu0 0
        %674 = vmatpush1.bf16.msra.mxu0 0
        %675 = vmatprep.subr.bf16.mxu0 0
        %676 = vmatpush1.bf16.msra.mxu0 0
        %677 = vmatprep.subr.bf16.mxu0 0
        %678 = vmatpush1.bf16.msra.mxu0 0
        %679 = vmatprep.subr.bf16.mxu0 0
        %680 = vmatpush1.bf16.msra.mxu0 0
        %681 = vmatprep.subr.bf16.mxu0 0
        %682 = vmatpush1.bf16.msra.mxu0 0
        %683 = vmatprep.mubr.bf16.mxu0 0
        %684 = vmatmul.mubr.bf16.gmra.mrb[0].mxu0 %v554
        %v685 = vpop.f32.mrb[0].mxu0
        %v686 = vadd.f32 0.0, %v685
        %v687 = vpop.f32.mrb[0].mxu0
        %v688 = vadd.f32 0.0, %v687
        %v689 = vpop.f32.mrb[0].mxu0
        %v690 = vpop.f32.mrb[0].mxu0
        %691 = vdwg.mxu0
        %693 = vrot.lane.b32.xlu0 %v686, 96
        %v694 = vpop.permute.xlu0 %693
        %696 = vrot.lane.b32.xlu0 %v686, 64
        %v697 = vpop.permute.xlu0 %696
        %699 = vrot.lane.b32.xlu0 %v686, 32
        %v700 = vpop.permute.xlu0 %699
        %703 = vrot.lane.b32.xlu0 %v688, 96
        %v704 = vpop.permute.xlu0 %703
        %706 = vrot.lane.b32.xlu0 %v688, 64
        %v707 = vpop.permute.xlu0 %706
        %709 = vrot.lane.b32.xlu0 %v688, 32
        %v710 = vpop.permute.xlu0 %709
        %v712 = vcombine.low %v686, %v697
        %v713 = vcombine.high %v686, %v697
        %v715 = vunpack.c.l.s4 1983009808
        %v716 = vunpack.c.0.s8 %v715
        %v717 = vlaneseq
        %v718 = vshrl.u32 %v717, 7
        %v719 = vsub.s32 %v716, %v718
        %v720 = vrot.slane %v712, %v719
        %v722 = vunpack.c.l.s4 1983009808
        %v723 = vunpack.c.0.s8 %v722
        %v724 = vlaneseq
        %v725 = vshrl.u32 %v724, 7
        %v726 = vsub.s32 %v723, %v725
        %v727 = vrot.slane %v713, %v726
        %v728 = vcombine.low %v694, %v700
        %v729 = vcombine.high %v694, %v700
        %v731 = vunpack.c.l.s4 1983009808
        %v732 = vunpack.c.0.s8 %v731
        %v733 = vlaneseq
        %v734 = vshrl.u32 %v733, 7
        %v735 = vsub.s32 %v732, %v734
        %v736 = vrot.slane %v728, %v735
        %v738 = vunpack.c.l.s4 1983009808
        %v739 = vunpack.c.0.s8 %v738
        %v740 = vlaneseq
        %v741 = vshrl.u32 %v740, 7
        %v742 = vsub.s32 %v739, %v741
        %v743 = vrot.slane %v729, %v742
        %v744 = vcombine.low %v688, %v707
        %v745 = vcombine.high %v688, %v707
        %v747 = vunpack.c.l.s4 1983009808
        %v748 = vunpack.c.0.s8 %v747
        %v749 = vlaneseq
        %v750 = vshrl.u32 %v749, 7
        %v751 = vsub.s32 %v748, %v750
        %v752 = vrot.slane %v744, %v751
        %v754 = vunpack.c.l.s4 1983009808
        %v755 = vunpack.c.0.s8 %v754
        %v756 = vlaneseq
        %v757 = vshrl.u32 %v756, 7
        %v758 = vsub.s32 %v755, %v757
        %v759 = vrot.slane %v745, %v758
        %v760 = vcombine.low %v704, %v710
        %v761 = vcombine.high %v704, %v710
        %v763 = vunpack.c.l.s4 1983009808
        %v764 = vunpack.c.0.s8 %v763
        %v765 = vlaneseq
        %v766 = vshrl.u32 %v765, 7
        %v767 = vsub.s32 %v764, %v766
        %v768 = vrot.slane %v760, %v767
        %v770 = vunpack.c.l.s4 1983009808
        %v771 = vunpack.c.0.s8 %v770
        %v772 = vlaneseq
        %v773 = vshrl.u32 %v772, 7
        %v774 = vsub.s32 %v771, %v773
        %v775 = vrot.slane %v761, %v774
        %v776 = vcombine.low %v720, %v736
        %v777 = vcombine.high %v720, %v736
        %v779 = vunpack.c.l.s4 1934713408
        %v780 = vunpack.c.0.s8 %v779
        %v781 = vlaneseq
        %v782 = vshrl.u32 %v781, 7
        %v783 = vsub.s32 %v780, %v782
        %v784 = vrot.slane %v776, %v783
        %v786 = vunpack.c.l.s4 1934713408
        %v787 = vunpack.c.0.s8 %v786
        %v788 = vlaneseq
        %v789 = vshrl.u32 %v788, 7
        %v790 = vsub.s32 %v787, %v789
        %v791 = vrot.slane %v777, %v790
        %v792 = vcombine.low %v727, %v743
        %v793 = vcombine.high %v727, %v743
        %v795 = vunpack.c.l.s4 1934713408
        %v796 = vunpack.c.0.s8 %v795
        %v797 = vlaneseq
        %v798 = vshrl.u32 %v797, 7
        %v799 = vsub.s32 %v796, %v798
        %v800 = vrot.slane %v792, %v799
        %v802 = vunpack.c.l.s4 1934713408
        %v803 = vunpack.c.0.s8 %v802
        %v804 = vlaneseq
        %v805 = vshrl.u32 %v804, 7
        %v806 = vsub.s32 %v803, %v805
        %v807 = vrot.slane %v793, %v806
        %v808 = vcombine.low %v752, %v768
        %v809 = vcombine.high %v752, %v768
        %v811 = vunpack.c.l.s4 1934713408
        %v812 = vunpack.c.0.s8 %v811
        %v813 = vlaneseq
        %v814 = vshrl.u32 %v813, 7
        %v815 = vsub.s32 %v812, %v814
        %v816 = vrot.slane %v808, %v815
        %v818 = vunpack.c.l.s4 1934713408
        %v819 = vunpack.c.0.s8 %v818
        %v820 = vlaneseq
        %v821 = vshrl.u32 %v820, 7
        %v822 = vsub.s32 %v819, %v821
        %v823 = vrot.slane %v809, %v822
        %v824 = vcombine.low %v759, %v775
        %v825 = vcombine.high %v759, %v775
        %v827 = vunpack.c.l.s4 1934713408
        %v828 = vunpack.c.0.s8 %v827
        %v829 = vlaneseq
        %v830 = vshrl.u32 %v829, 7
        %v831 = vsub.s32 %v828, %v830
        %v832 = vrot.slane %v824, %v831
        %v834 = vunpack.c.l.s4 1934713408
        %v835 = vunpack.c.0.s8 %v834
        %v836 = vlaneseq
        %v837 = vshrl.u32 %v836, 7
        %v838 = vsub.s32 %v835, %v837
        %v839 = vrot.slane %v825, %v838
        %v840 = vcombine.low %v784, %v816
        %v841 = vcombine.high %v784, %v816
        %v842 = vcombine.low %v791, %v823
        %v843 = vcombine.high %v791, %v823
        %v844 = vcombine.low %v800, %v832
        %v845 = vcombine.high %v800, %v832
        %v846 = vcombine.low %v807, %v839
        %v847 = vcombine.high %v807, %v839
        %v848 = vcombine.low %v840, %v842
        %v849 = vcombine.high %v840, %v842
        %v851 = vunpack.c.l.s4 1983009808
        %v852 = vunpack.c.0.s8 %v851
        %v853 = vlaneseq
        %v854 = vshrl.u32 %v853, 7
        %v855 = vsub.s32 %v852, %v854
        %v856 = vrot.slane %v848, %v855
        %v858 = vunpack.c.l.s4 1983009808
        %v859 = vunpack.c.0.s8 %v858
        %v860 = vlaneseq
        %v861 = vshrl.u32 %v860, 7
        %v862 = vsub.s32 %v859, %v861
        %v863 = vrot.slane %v849, %v862
        %v864 = vcombine.low %v841, %v843
        %v865 = vcombine.high %v841, %v843
        %v867 = vunpack.c.l.s4 1983009808
        %v868 = vunpack.c.0.s8 %v867
        %v869 = vlaneseq
        %v870 = vshrl.u32 %v869, 7
        %v871 = vsub.s32 %v868, %v870
        %v872 = vrot.slane %v864, %v871
        %v874 = vunpack.c.l.s4 1983009808
        %v875 = vunpack.c.0.s8 %v874
        %v876 = vlaneseq
        %v877 = vshrl.u32 %v876, 7
        %v878 = vsub.s32 %v875, %v877
        %v879 = vrot.slane %v865, %v878
        %v880 = vcombine.low %v844, %v846
        %v881 = vcombine.high %v844, %v846
        %v883 = vunpack.c.l.s4 1983009808
        %v884 = vunpack.c.0.s8 %v883
        %v885 = vlaneseq
        %v886 = vshrl.u32 %v885, 7
        %v887 = vsub.s32 %v884, %v886
        %v888 = vrot.slane %v880, %v887
        %v890 = vunpack.c.l.s4 1983009808
        %v891 = vunpack.c.0.s8 %v890
        %v892 = vlaneseq
        %v893 = vshrl.u32 %v892, 7
        %v894 = vsub.s32 %v891, %v893
        %v895 = vrot.slane %v881, %v894
        %v896 = vcombine.low %v845, %v847
        %v897 = vcombine.high %v845, %v847
        %v899 = vunpack.c.l.s4 1983009808
        %v900 = vunpack.c.0.s8 %v899
        %v901 = vlaneseq
        %v902 = vshrl.u32 %v901, 7
        %v903 = vsub.s32 %v900, %v902
        %v904 = vrot.slane %v896, %v903
        %v906 = vunpack.c.l.s4 1983009808
        %v907 = vunpack.c.0.s8 %v906
        %v908 = vlaneseq
        %v909 = vshrl.u32 %v908, 7
        %v910 = vsub.s32 %v907, %v909
        %v911 = vrot.slane %v897, %v910
        %v912 = vcombine.low %v856, %v872
        %v913 = vcombine.high %v856, %v872
        %v915 = vunpack.c.l.s4 1934713408
        %v916 = vunpack.c.0.s8 %v915
        %v917 = vlaneseq
        %v918 = vshrl.u32 %v917, 7
        %v919 = vsub.s32 %v916, %v918
        %v920 = vrot.slane %v912, %v919
        %v922 = vunpack.c.l.s4 1934713408
        %v923 = vunpack.c.0.s8 %v922
        %v924 = vlaneseq
        %v925 = vshrl.u32 %v924, 7
        %v926 = vsub.s32 %v923, %v925
        %v927 = vrot.slane %v913, %v926
        %v928 = vcombine.low %v863, %v879
        %v929 = vcombine.high %v863, %v879
        %v931 = vunpack.c.l.s4 1934713408
        %v932 = vunpack.c.0.s8 %v931
        %v933 = vlaneseq
        %v934 = vshrl.u32 %v933, 7
        %v935 = vsub.s32 %v932, %v934
        %v936 = vrot.slane %v928, %v935
        %v938 = vunpack.c.l.s4 1934713408
        %v939 = vunpack.c.0.s8 %v938
        %v940 = vlaneseq
        %v941 = vshrl.u32 %v940, 7
        %v942 = vsub.s32 %v939, %v941
        %v943 = vrot.slane %v929, %v942
        %v944 = vcombine.low %v888, %v904
        %v945 = vcombine.high %v888, %v904
        %v947 = vunpack.c.l.s4 1934713408
        %v948 = vunpack.c.0.s8 %v947
        %v949 = vlaneseq
        %v950 = vshrl.u32 %v949, 7
        %v951 = vsub.s32 %v948, %v950
        %v952 = vrot.slane %v944, %v951
        %v954 = vunpack.c.l.s4 1934713408
        %v955 = vunpack.c.0.s8 %v954
        %v956 = vlaneseq
        %v957 = vshrl.u32 %v956, 7
        %v958 = vsub.s32 %v955, %v957
        %v959 = vrot.slane %v945, %v958
        %v960 = vcombine.low %v895, %v911
        %v961 = vcombine.high %v895, %v911
        %v963 = vunpack.c.l.s4 1934713408
        %v964 = vunpack.c.0.s8 %v963
        %v965 = vlaneseq
        %v966 = vshrl.u32 %v965, 7
        %v967 = vsub.s32 %v964, %v966
        %v968 = vrot.slane %v960, %v967
        %v970 = vunpack.c.l.s4 1934713408
        %v971 = vunpack.c.0.s8 %v970
        %v972 = vlaneseq
        %v973 = vshrl.u32 %v972, 7
        %v974 = vsub.s32 %v971, %v973
        %v975 = vrot.slane %v961, %v974
        %v976 = vcombine.low %v920, %v952
        %v977 = vcombine.high %v920, %v952
        %v978 = vcombine.low %v927, %v959
        %v979 = vcombine.high %v927, %v959
        %v980 = vcombine.low %v936, %v968
        %v981 = vcombine.high %v936, %v968
        %v982 = vcombine.low %v943, %v975
        %v983 = vcombine.high %v943, %v975
        %v984 = vld [vmem:[%s1] sm:$0xff]
        %v985 = vld [vmem:[%s2] sm:$0xff]
        %v986 = vsub.f32 0.0, %v976
        %v987 = vsub.f32 0.0, %v977
        %v988 = vsub.f32 0.0, %v978
        %v989 = vsub.f32 0.0, %v979
        %994 = vrot.lane.b32.xlu0 %v986, 112
        %v995 = vpop.permute.xlu0 %994
        %996 = vrot.lane.b32.xlu0 %v987, 112
        %v997 = vpop.permute.xlu0 %996
        %998 = vrot.lane.b32.xlu0 %v988, 112
        %v999 = vpop.permute.xlu0 %998
        %1000 = vrot.lane.b32.xlu0 %v989, 112
        %v1001 = vpop.permute.xlu0 %1000
        %1010 = vrot.lane.b32.xlu0 %v976, 16
        %v1011 = vpop.permute.xlu0 %1010
        %1012 = vrot.lane.b32.xlu0 %v977, 16
        %v1013 = vpop.permute.xlu0 %1012
        %1014 = vrot.lane.b32.xlu0 %v978, 16
        %v1015 = vpop.permute.xlu0 %1014
        %1016 = vrot.lane.b32.xlu0 %v979, 16
        %v1017 = vpop.permute.xlu0 %1016
        %vm1022 = vcmask 130048
        %v1023 = vsel %vm1022, %v995, %v1011
        %v1024 = vsel %vm1022, %v997, %v1013
        %v1025 = vsel %vm1022, %v999, %v1015
        %v1026 = vsel %vm1022, %v1001, %v1017
        %v1027 = vmul.f32 %v976, %v984
        %v1028 = vmul.f32 %v977, %v984
        %v1029 = vmul.f32 %v978, %v984
        %v1030 = vmul.f32 %v979, %v984
        %v1031 = vmul.f32 %v1023, %v985
        %v1032 = vmul.f32 %v1024, %v985
        %v1033 = vmul.f32 %v1025, %v985
        %v1034 = vmul.f32 %v1026, %v985
        %v1035 = vadd.f32 %v1027, %v1031
        %v1036 = vadd.f32 %v1028, %v1032
        %v1037 = vadd.f32 %v1029, %v1033
        %v1038 = vadd.f32 %v1030, %v1034
        %v1039 = vmul.f32 %v1035, 0.17677669
        %v1040 = vmul.f32 %v1036, 0.17677669
        %v1041 = vmul.f32 %v1037, 0.17677669
        %v1042 = vmul.f32 %v1038, 0.17677669
        %v1043 = vpack.c.bf16 %v1039, %v1039
        %v1044 = vpack.c.bf16 %v1040, %v1040
        %v1045 = vpack.c.bf16 %v1041, %v1041
        %v1046 = vpack.c.bf16 %v1042, %v1042
        %v1047 = vsub.f32 0.0, %v980
        %v1048 = vsub.f32 0.0, %v981
        %1051 = vrot.lane.b32.xlu0 %v1047, 112
        %v1052 = vpop.permute.xlu0 %1051
        %1053 = vrot.lane.b32.xlu0 %v1048, 112
        %v1054 = vpop.permute.xlu0 %1053
        %1059 = vrot.lane.b32.xlu0 %v980, 16
        %v1060 = vpop.permute.xlu0 %1059
        %1061 = vrot.lane.b32.xlu0 %v981, 16
        %v1062 = vpop.permute.xlu0 %1061
        %v1065 = vsel %vm1022, %v1052, %v1060
        %v1066 = vsel %vm1022, %v1054, %v1062
        %v1067 = vmul.f32 %v980, %v984
        %v1068 = vmul.f32 %v981, %v984
        %v1069 = vmul.f32 %v1065, %v985
        %v1070 = vmul.f32 %v1066, %v985
        %v1071 = vadd.f32 %v1067, %v1069
        %v1072 = vadd.f32 %v1068, %v1070
        %v1073 = vpack.c.bf16 %v1071, %v1071
        %v1074 = vpack.c.bf16 %v1072, %v1072
        %v1075 = vpack.c.bf16 %v982, %v982
        %v1076 = vpack.c.bf16 %v983, %v983
        %vm1077 = vcmask 261120
        %v1079 = vsel %vm1077, %v1043, 0
        %v1082 = vsel %vm1077, %v1073, 0
        %1084 = vmatprep.subr.bf16.mxu0 0
        %1085 = vmatpush1.bf16.xpose.msra.mxu0 %v1082
        %1086 = vmatprep.subr.bf16.mxu0 0
        %1087 = vmatpush1.bf16.xpose.msra.mxu0 0
        %1088 = vmatprep.subr.bf16.mxu0 0
        %1089 = vmatpush1.bf16.xpose.msra.mxu0 0
        %1090 = vmatprep.subr.bf16.mxu0 0
        %1091 = vmatpush1.bf16.xpose.msra.mxu0 0
        %1092 = vmatprep.subr.bf16.mxu0 0
        %1093 = vmatpush1.bf16.xpose.msra.mxu0 0
        %1094 = vmatprep.subr.bf16.mxu0 0
        %1095 = vmatpush1.bf16.xpose.msra.mxu0 0
        %1096 = vmatprep.subr.bf16.mxu0 0
        %1097 = vmatpush1.bf16.xpose.msra.mxu0 0
        %1098 = vmatprep.subr.bf16.mxu0 0
        %1099 = vmatpush1.bf16.xpose.msra.mxu0 0
        %1100 = vmatprep.subr.bf16.mxu0 0
        %1101 = vmatpush1.bf16.xpose.msra.mxu0 0
        %1102 = vmatprep.subr.bf16.mxu0 0
        %1103 = vmatpush1.bf16.xpose.msra.mxu0 0
        %1104 = vmatprep.subr.bf16.mxu0 0
        %1105 = vmatpush1.bf16.xpose.msra.mxu0 0
        %1106 = vmatprep.subr.bf16.mxu0 0
        %1107 = vmatpush1.bf16.xpose.msra.mxu0 0
        %1108 = vmatprep.subr.bf16.mxu0 0
        %1109 = vmatpush1.bf16.xpose.msra.mxu0 0
        %1110 = vmatprep.subr.bf16.mxu0 0
        %1111 = vmatpush1.bf16.xpose.msra.mxu0 0
        %1112 = vmatprep.subr.bf16.mxu0 0
        %1113 = vmatpush1.bf16.xpose.msra.mxu0 0
        %1114 = vmatprep.subr.bf16.mxu0 0
        %1115 = vmatpush1.bf16.xpose.msra.mxu0 0
        %1116 = vmatprep.mubr.bf16.mxu0 0
        %1117 = vmatmul.mubr.bf16.gmra.mrb[0].mxu0 %v1079
        %v1118 = vpop.f32.mrb[0].mxu0
        %v1119 = vadd.f32 0.0, %v1118
        %v1120 = vpop.f32.mrb[0].mxu0
        %v1121 = vpop.f32.mrb[0].mxu0
        %v1122 = vpop.f32.mrb[0].mxu0
        %1123 = vdwg.mxu0
        %v1125 = vsel %vm1077, %v1044, 0
        %1127 = vmatprep.subr.bf16.mxu0 0
        %1128 = vmatpush1.bf16.xpose.msra.mxu0 %v1082
        %1129 = vmatprep.subr.bf16.mxu0 0
        %1130 = vmatpush1.bf16.xpose.msra.mxu0 0
        %1131 = vmatprep.subr.bf16.mxu0 0
        %1132 = vmatpush1.bf16.xpose.msra.mxu0 0
        %1133 = vmatprep.subr.bf16.mxu0 0
        %1134 = vmatpush1.bf16.xpose.msra.mxu0 0
        %1135 = vmatprep.subr.bf16.mxu0 0
        %1136 = vmatpush1.bf16.xpose.msra.mxu0 0
        %1137 = vmatprep.subr.bf16.mxu0 0
        %1138 = vmatpush1.bf16.xpose.msra.mxu0 0
        %1139 = vmatprep.subr.bf16.mxu0 0
        %1140 = vmatpush1.bf16.xpose.msra.mxu0 0
        %1141 = vmatprep.subr.bf16.mxu0 0
        %1142 = vmatpush1.bf16.xpose.msra.mxu0 0
        %1143 = vmatprep.subr.bf16.mxu0 0
        %1144 = vmatpush1.bf16.xpose.msra.mxu0 0
        %1145 = vmatprep.subr.bf16.mxu0 0
        %1146 = vmatpush1.bf16.xpose.msra.mxu0 0
        %1147 = vmatprep.subr.bf16.mxu0 0
        %1148 = vmatpush1.bf16.xpose.msra.mxu0 0
        %1149 = vmatprep.subr.bf16.mxu0 0
        %1150 = vmatpush1.bf16.xpose.msra.mxu0 0
        %1151 = vmatprep.subr.bf16.mxu0 0
        %1152 = vmatpush1.bf16.xpose.msra.mxu0 0
        %1153 = vmatprep.subr.bf16.mxu0 0
        %1154 = vmatpush1.bf16.xpose.msra.mxu0 0
        %1155 = vmatprep.subr.bf16.mxu0 0
        %1156 = vmatpush1.bf16.xpose.msra.mxu0 0
        %1157 = vmatprep.subr.bf16.mxu0 0
        %1158 = vmatpush1.bf16.xpose.msra.mxu0 0
        %1159 = vmatprep.mubr.bf16.mxu0 0
        %1160 = vmatmul.mubr.bf16.gmra.mrb[0].mxu0 %v1125
        %v1161 = vpop.f32.mrb[0].mxu0
        %v1162 = vadd.f32 0.0, %v1161
        %v1163 = vpop.f32.mrb[0].mxu0
        %v1164 = vpop.f32.mrb[0].mxu0
        %v1165 = vpop.f32.mrb[0].mxu0
        %1166 = vdwg.mxu0
        %v1168 = vsel %vm1077, %v1045, 0
        %v1171 = vsel %vm1077, %v1074, 0
        %1173 = vmatprep.subr.bf16.mxu0 0
        %1174 = vmatpush1.bf16.xpose.msra.mxu0 %v1171
        %1175 = vmatprep.subr.bf16.mxu0 0
        %1176 = vmatpush1.bf16.xpose.msra.mxu0 0
        %1177 = vmatprep.subr.bf16.mxu0 0
        %1178 = vmatpush1.bf16.xpose.msra.mxu0 0
        %1179 = vmatprep.subr.bf16.mxu0 0
        %1180 = vmatpush1.bf16.xpose.msra.mxu0 0
        %1181 = vmatprep.subr.bf16.mxu0 0
        %1182 = vmatpush1.bf16.xpose.msra.mxu0 0
        %1183 = vmatprep.subr.bf16.mxu0 0
        %1184 = vmatpush1.bf16.xpose.msra.mxu0 0
        %1185 = vmatprep.subr.bf16.mxu0 0
        %1186 = vmatpush1.bf16.xpose.msra.mxu0 0
        %1187 = vmatprep.subr.bf16.mxu0 0
        %1188 = vmatpush1.bf16.xpose.msra.mxu0 0
        %1189 = vmatprep.subr.bf16.mxu0 0
        %1190 = vmatpush1.bf16.xpose.msra.mxu0 0
        %1191 = vmatprep.subr.bf16.mxu0 0
        %1192 = vmatpush1.bf16.xpose.msra.mxu0 0
        %1193 = vmatprep.subr.bf16.mxu0 0
        %1194 = vmatpush1.bf16.xpose.msra.mxu0 0
        %1195 = vmatprep.subr.bf16.mxu0 0
        %1196 = vmatpush1.bf16.xpose.msra.mxu0 0
        %1197 = vmatprep.subr.bf16.mxu0 0
        %1198 = vmatpush1.bf16.xpose.msra.mxu0 0
        %1199 = vmatprep.subr.bf16.mxu0 0
        %1200 = vmatpush1.bf16.xpose.msra.mxu0 0
        %1201 = vmatprep.subr.bf16.mxu0 0
        %1202 = vmatpush1.bf16.xpose.msra.mxu0 0
        %1203 = vmatprep.subr.bf16.mxu0 0
        %1204 = vmatpush1.bf16.xpose.msra.mxu0 0
        %1205 = vmatprep.mubr.bf16.mxu0 0
        %1206 = vmatmul.mubr.bf16.gmra.mrb[0].mxu0 %v1168
        %v1207 = vpop.f32.mrb[0].mxu0
        %v1208 = vadd.f32 0.0, %v1207
        %v1209 = vpop.f32.mrb[0].mxu0
        %v1210 = vpop.f32.mrb[0].mxu0
        %v1211 = vpop.f32.mrb[0].mxu0
        %1212 = vdwg.mxu0
        %v1214 = vsel %vm1077, %v1046, 0
        %1216 = vmatprep.subr.bf16.mxu0 0
        %1217 = vmatpush1.bf16.xpose.msra.mxu0 %v1171
        %1218 = vmatprep.subr.bf16.mxu0 0
        %1219 = vmatpush1.bf16.xpose.msra.mxu0 0
        %1220 = vmatprep.subr.bf16.mxu0 0
        %1221 = vmatpush1.bf16.xpose.msra.mxu0 0
        %1222 = vmatprep.subr.bf16.mxu0 0
        %1223 = vmatpush1.bf16.xpose.msra.mxu0 0
        %1224 = vmatprep.subr.bf16.mxu0 0
        %1225 = vmatpush1.bf16.xpose.msra.mxu0 0
        %1226 = vmatprep.subr.bf16.mxu0 0
        %1227 = vmatpush1.bf16.xpose.msra.mxu0 0
        %1228 = vmatprep.subr.bf16.mxu0 0
        %1229 = vmatpush1.bf16.xpose.msra.mxu0 0
        %1230 = vmatprep.subr.bf16.mxu0 0
        %1231 = vmatpush1.bf16.xpose.msra.mxu0 0
        %1232 = vmatprep.subr.bf16.mxu0 0
        %1233 = vmatpush1.bf16.xpose.msra.mxu0 0
        %1234 = vmatprep.subr.bf16.mxu0 0
        %1235 = vmatpush1.bf16.xpose.msra.mxu0 0
        %1236 = vmatprep.subr.bf16.mxu0 0
        %1237 = vmatpush1.bf16.xpose.msra.mxu0 0
        %1238 = vmatprep.subr.bf16.mxu0 0
        %1239 = vmatpush1.bf16.xpose.msra.mxu0 0
        %1240 = vmatprep.subr.bf16.mxu0 0
        %1241 = vmatpush1.bf16.xpose.msra.mxu0 0
        %1242 = vmatprep.subr.bf16.mxu0 0
        %1243 = vmatpush1.bf16.xpose.msra.mxu0 0
        %1244 = vmatprep.subr.bf16.mxu0 0
        %1245 = vmatpush1.bf16.xpose.msra.mxu0 0
        %1246 = vmatprep.subr.bf16.mxu0 0
        %1247 = vmatpush1.bf16.xpose.msra.mxu0 0
        %1248 = vmatprep.mubr.bf16.mxu0 0
        %1249 = vmatmul.mubr.bf16.gmra.mrb[0].mxu0 %v1214
        %v1250 = vpop.f32.mrb[0].mxu0
        %v1251 = vadd.f32 0.0, %v1250
        %v1252 = vpop.f32.mrb[0].mxu0
        %v1253 = vpop.f32.mrb[0].mxu0
        %v1254 = vpop.f32.mrb[0].mxu0
        %1255 = vdwg.mxu0
        %v1256 = vlaneseq
        %v1257 = vshrl.u32 %v1256, 7
        %v1258 = vlaneseq
        %v1259 = vand.u32 %v1258, 127
        %vm1260 = vcmp.le.s32.totalorder %v1259, %v1257
        %v1261 = vsel %vm1260, 1, 0
        %vm1262 = vcmp.eq.s32.totalorder %v1261, 1
        %v1263 = vsel %vm1262, %v1119, -1e+30
        %v1264 = vsel %vm1262, %v1162, -1e+30
        %v1265 = vsel %vm1262, %v1208, -1e+30
        %v1266 = vsel %vm1262, %v1251, -1e+30
        %vm1267 = vcmask 64512
        %v1268 = vsel %vm1267, %v1263, -inf
        %1269 = vmax.xlane.f32.xlu0 %v1268
        %v1270 = vpop.xlane.xlu0 %1269
        %v1271 = vsel %vm1267, %v1264, -inf
        %1272 = vmax.xlane.f32.xlu0 %v1271
        %v1273 = vpop.xlane.xlu0 %1272
        %v1274 = vsel %vm1267, %v1265, -inf
        %1275 = vmax.xlane.f32.xlu0 %v1274
        %v1276 = vpop.xlane.xlu0 %1275
        %v1277 = vsel %vm1267, %v1266, -inf
        %1278 = vmax.xlane.f32.xlu0 %v1277
        %v1279 = vpop.xlane.xlu0 %1278
        %v1280 = vsub.f32 %v1263, %v1270
        %v1281 = vsub.f32 %v1264, %v1273
        %v1282 = vsub.f32 %v1265, %v1276
        %v1283 = vsub.f32 %v1266, %v1279
        %v1284 = vmul.f32 %v1280, 1.442695
        %v1285 = vpow.pop %v1284
        %v1286 = vmul.f32 %v1281, 1.442695
        %v1287 = vpow.pop %v1286
        %v1288 = vmul.f32 %v1282, 1.442695
        %v1289 = vpow.pop %v1288
        %v1290 = vmul.f32 %v1283, 1.442695
        %v1291 = vpow.pop %v1290
        %v1292 = vsel %vm1267, %v1285, 0.0
        %1293 = vadd.xlane.f32.xlu0 %v1292
        %v1294 = vpop.xlane.xlu0 %1293
        %v1295 = vsel %vm1267, %v1287, 0.0
        %1296 = vadd.xlane.f32.xlu0 %v1295
        %v1297 = vpop.xlane.xlu0 %1296
        %v1298 = vsel %vm1267, %v1289, 0.0
        %1299 = vadd.xlane.f32.xlu0 %v1298
        %v1300 = vpop.xlane.xlu0 %1299
        %v1301 = vsel %vm1267, %v1291, 0.0
        %1302 = vadd.xlane.f32.xlu0 %v1301
        %v1303 = vpop.xlane.xlu0 %1302
        %v1304 = vrcp.pop %v1294
        %v1305 = vrcp.pop %v1297
        %v1306 = vrcp.pop %v1300
        %v1307 = vrcp.pop %v1303
        %v1308 = vmul.f32 %v1285, %v1304
        %v1309 = vmul.f32 %v1287, %v1305
        %v1310 = vmul.f32 %v1289, %v1306
        %v1311 = vmul.f32 %v1291, %v1307
        %v1312 = vpack.c.bf16 %v1308, %v1308
        %v1313 = vpack.c.bf16 %v1309, %v1309
        %v1314 = vpack.c.bf16 %v1310, %v1310
        %v1315 = vpack.c.bf16 %v1311, %v1311
        %v1317 = vsel %vm1267, %v1312, 0
        %vm1319 = vcmask 1043456
        %v1321 = vsel %vm1319, %v1075, 0
        %1323 = vmatprep.subr.bf16.mxu0 0
        %1324 = vmatpush1.bf16.msra.mxu0 %v1321
        %1325 = vmatprep.subr.bf16.mxu0 0
        %1326 = vmatpush1.bf16.msra.mxu0 0
        %1327 = vmatprep.subr.bf16.mxu0 0
        %1328 = vmatpush1.bf16.msra.mxu0 0
        %1329 = vmatprep.subr.bf16.mxu0 0
        %1330 = vmatpush1.bf16.msra.mxu0 0
        %1331 = vmatprep.subr.bf16.mxu0 0
        %1332 = vmatpush1.bf16.msra.mxu0 0
        %1333 = vmatprep.subr.bf16.mxu0 0
        %1334 = vmatpush1.bf16.msra.mxu0 0
        %1335 = vmatprep.subr.bf16.mxu0 0
        %1336 = vmatpush1.bf16.msra.mxu0 0
        %1337 = vmatprep.subr.bf16.mxu0 0
        %1338 = vmatpush1.bf16.msra.mxu0 0
        %1339 = vmatprep.subr.bf16.mxu0 0
        %1340 = vmatpush1.bf16.msra.mxu0 0
        %1341 = vmatprep.subr.bf16.mxu0 0
        %1342 = vmatpush1.bf16.msra.mxu0 0
        %1343 = vmatprep.subr.bf16.mxu0 0
        %1344 = vmatpush1.bf16.msra.mxu0 0
        %1345 = vmatprep.subr.bf16.mxu0 0
        %1346 = vmatpush1.bf16.msra.mxu0 0
        %1347 = vmatprep.subr.bf16.mxu0 0
        %1348 = vmatpush1.bf16.msra.mxu0 0
        %1349 = vmatprep.subr.bf16.mxu0 0
        %1350 = vmatpush1.bf16.msra.mxu0 0
        %1351 = vmatprep.subr.bf16.mxu0 0
        %1352 = vmatpush1.bf16.msra.mxu0 0
        %1353 = vmatprep.subr.bf16.mxu0 0
        %1354 = vmatpush1.bf16.msra.mxu0 0
        %1355 = vmatprep.mubr.bf16.mxu0 0
        %1356 = vmatmul.mubr.bf16.gmra.mrb[0].mxu0 %v1317
        %v1357 = vpop.f32.mrb[0].mxu0
        %v1358 = vadd.f32 0.0, %v1357
        %v1359 = vpop.f32.mrb[0].mxu0
        %v1360 = vpop.f32.mrb[0].mxu0
        %v1361 = vpop.f32.mrb[0].mxu0
        %1362 = vdwg.mxu0
        %v1364 = vsel %vm1267, %v1313, 0
        %1366 = vmatprep.subr.bf16.mxu0 0
        %1367 = vmatpush1.bf16.msra.mxu0 %v1321
        %1368 = vmatprep.subr.bf16.mxu0 0
        %1369 = vmatpush1.bf16.msra.mxu0 0
        %1370 = vmatprep.subr.bf16.mxu0 0
        %1371 = vmatpush1.bf16.msra.mxu0 0
        %1372 = vmatprep.subr.bf16.mxu0 0
        %1373 = vmatpush1.bf16.msra.mxu0 0
        %1374 = vmatprep.subr.bf16.mxu0 0
        %1375 = vmatpush1.bf16.msra.mxu0 0
        %1376 = vmatprep.subr.bf16.mxu0 0
        %1377 = vmatpush1.bf16.msra.mxu0 0
        %1378 = vmatprep.subr.bf16.mxu0 0
        %1379 = vmatpush1.bf16.msra.mxu0 0
        %1380 = vmatprep.subr.bf16.mxu0 0
        %1381 = vmatpush1.bf16.msra.mxu0 0
        %1382 = vmatprep.subr.bf16.mxu0 0
        %1383 = vmatpush1.bf16.msra.mxu0 0
        %1384 = vmatprep.subr.bf16.mxu0 0
        %1385 = vmatpush1.bf16.msra.mxu0 0
        %1386 = vmatprep.subr.bf16.mxu0 0
        %1387 = vmatpush1.bf16.msra.mxu0 0
        %1388 = vmatprep.subr.bf16.mxu0 0
        %1389 = vmatpush1.bf16.msra.mxu0 0
        %1390 = vmatprep.subr.bf16.mxu0 0
        %1391 = vmatpush1.bf16.msra.mxu0 0
        %1392 = vmatprep.subr.bf16.mxu0 0
        %1393 = vmatpush1.bf16.msra.mxu0 0
        %1394 = vmatprep.subr.bf16.mxu0 0
        %1395 = vmatpush1.bf16.msra.mxu0 0
        %1396 = vmatprep.subr.bf16.mxu0 0
        %1397 = vmatpush1.bf16.msra.mxu0 0
        %1398 = vmatprep.mubr.bf16.mxu0 0
        %1399 = vmatmul.mubr.bf16.gmra.mrb[0].mxu0 %v1364
        %v1400 = vpop.f32.mrb[0].mxu0
        %v1401 = vadd.f32 0.0, %v1400
        %v1402 = vpop.f32.mrb[0].mxu0
        %v1403 = vpop.f32.mrb[0].mxu0
        %v1404 = vpop.f32.mrb[0].mxu0
        %1405 = vdwg.mxu0
        %v1407 = vsel %vm1267, %v1314, 0
        %v1410 = vsel %vm1319, %v1076, 0
        %1412 = vmatprep.subr.bf16.mxu0 0
        %1413 = vmatpush1.bf16.msra.mxu0 %v1410
        %1414 = vmatprep.subr.bf16.mxu0 0
        %1415 = vmatpush1.bf16.msra.mxu0 0
        %1416 = vmatprep.subr.bf16.mxu0 0
        %1417 = vmatpush1.bf16.msra.mxu0 0
        %1418 = vmatprep.subr.bf16.mxu0 0
        %1419 = vmatpush1.bf16.msra.mxu0 0
        %1420 = vmatprep.subr.bf16.mxu0 0
        %1421 = vmatpush1.bf16.msra.mxu0 0
        %1422 = vmatprep.subr.bf16.mxu0 0
        %1423 = vmatpush1.bf16.msra.mxu0 0
        %1424 = vmatprep.subr.bf16.mxu0 0
        %1425 = vmatpush1.bf16.msra.mxu0 0
        %1426 = vmatprep.subr.bf16.mxu0 0
        %1427 = vmatpush1.bf16.msra.mxu0 0
        %1428 = vmatprep.subr.bf16.mxu0 0
        %1429 = vmatpush1.bf16.msra.mxu0 0
        %1430 = vmatprep.subr.bf16.mxu0 0
        %1431 = vmatpush1.bf16.msra.mxu0 0
        %1432 = vmatprep.subr.bf16.mxu0 0
        %1433 = vmatpush1.bf16.msra.mxu0 0
        %1434 = vmatprep.subr.bf16.mxu0 0
        %1435 = vmatpush1.bf16.msra.mxu0 0
        %1436 = vmatprep.subr.bf16.mxu0 0
        %1437 = vmatpush1.bf16.msra.mxu0 0
        %1438 = vmatprep.subr.bf16.mxu0 0
        %1439 = vmatpush1.bf16.msra.mxu0 0
        %1440 = vmatprep.subr.bf16.mxu0 0
        %1441 = vmatpush1.bf16.msra.mxu0 0
        %1442 = vmatprep.subr.bf16.mxu0 0
        %1443 = vmatpush1.bf16.msra.mxu0 0
        %1444 = vmatprep.mubr.bf16.mxu0 0
        %1445 = vmatmul.mubr.bf16.gmra.mrb[0].mxu0 %v1407
        %v1446 = vpop.f32.mrb[0].mxu0
        %v1447 = vadd.f32 0.0, %v1446
        %v1448 = vpop.f32.mrb[0].mxu0
        %v1449 = vpop.f32.mrb[0].mxu0
        %v1450 = vpop.f32.mrb[0].mxu0
        %1451 = vdwg.mxu0
        %v1453 = vsel %vm1267, %v1315, 0
        %1455 = vmatprep.subr.bf16.mxu0 0
        %1456 = vmatpush1.bf16.msra.mxu0 %v1410
        %1457 = vmatprep.subr.bf16.mxu0 0
        %1458 = vmatpush1.bf16.msra.mxu0 0
        %1459 = vmatprep.subr.bf16.mxu0 0
        %1460 = vmatpush1.bf16.msra.mxu0 0
        %1461 = vmatprep.subr.bf16.mxu0 0
        %1462 = vmatpush1.bf16.msra.mxu0 0
        %1463 = vmatprep.subr.bf16.mxu0 0
        %1464 = vmatpush1.bf16.msra.mxu0 0
        %1465 = vmatprep.subr.bf16.mxu0 0
        %1466 = vmatpush1.bf16.msra.mxu0 0
        %1467 = vmatprep.subr.bf16.mxu0 0
        %1468 = vmatpush1.bf16.msra.mxu0 0
        %1469 = vmatprep.subr.bf16.mxu0 0
        %1470 = vmatpush1.bf16.msra.mxu0 0
        %1471 = vmatprep.subr.bf16.mxu0 0
        %1472 = vmatpush1.bf16.msra.mxu0 0
        %1473 = vmatprep.subr.bf16.mxu0 0
        %1474 = vmatpush1.bf16.msra.mxu0 0
        %1475 = vmatprep.subr.bf16.mxu0 0
        %1476 = vmatpush1.bf16.msra.mxu0 0
        %1477 = vmatprep.subr.bf16.mxu0 0
        %1478 = vmatpush1.bf16.msra.mxu0 0
        %1479 = vmatprep.subr.bf16.mxu0 0
        %1480 = vmatpush1.bf16.msra.mxu0 0
        %1481 = vmatprep.subr.bf16.mxu0 0
        %1482 = vmatpush1.bf16.msra.mxu0 0
        %1483 = vmatprep.subr.bf16.mxu0 0
        %1484 = vmatpush1.bf16.msra.mxu0 0
        %1485 = vmatprep.subr.bf16.mxu0 0
        %1486 = vmatpush1.bf16.msra.mxu0 0
        %1487 = vmatprep.mubr.bf16.mxu0 0
        %1488 = vmatmul.mubr.bf16.gmra.mrb[0].mxu0 %v1453
        %v1489 = vpop.f32.mrb[0].mxu0
        %v1490 = vadd.f32 0.0, %v1489
        %v1491 = vpop.f32.mrb[0].mxu0
        %v1492 = vpop.f32.mrb[0].mxu0
        %v1493 = vpop.f32.mrb[0].mxu0
        %1494 = vdwg.mxu0
        %v1495 = vcombine.low %v1358, %v1447
        %v1496 = vcombine.high %v1358, %v1447
        %v1498 = vunpack.c.l.s4 1983009808
        %v1499 = vunpack.c.0.s8 %v1498
        %v1500 = vlaneseq
        %v1501 = vshrl.u32 %v1500, 7
        %v1502 = vsub.s32 %v1499, %v1501
        %v1503 = vrot.slane %v1495, %v1502
        %v1505 = vunpack.c.l.s4 1983009808
        %v1506 = vunpack.c.0.s8 %v1505
        %v1507 = vlaneseq
        %v1508 = vshrl.u32 %v1507, 7
        %v1509 = vsub.s32 %v1506, %v1508
        %v1510 = vrot.slane %v1496, %v1509
        %v1511 = vcombine.low %v1401, %v1490
        %v1512 = vcombine.high %v1401, %v1490
        %v1514 = vunpack.c.l.s4 1983009808
        %v1515 = vunpack.c.0.s8 %v1514
        %v1516 = vlaneseq
        %v1517 = vshrl.u32 %v1516, 7
        %v1518 = vsub.s32 %v1515, %v1517
        %v1519 = vrot.slane %v1511, %v1518
        %v1521 = vunpack.c.l.s4 1983009808
        %v1522 = vunpack.c.0.s8 %v1521
        %v1523 = vlaneseq
        %v1524 = vshrl.u32 %v1523, 7
        %v1525 = vsub.s32 %v1522, %v1524
        %v1526 = vrot.slane %v1512, %v1525
        %v1527 = vcombine.low %v1503, %v1519
        %v1528 = vcombine.high %v1503, %v1519
        %v1530 = vunpack.c.l.s4 1934713408
        %v1531 = vunpack.c.0.s8 %v1530
        %v1532 = vlaneseq
        %v1533 = vshrl.u32 %v1532, 7
        %v1534 = vsub.s32 %v1531, %v1533
        %v1535 = vrot.slane %v1527, %v1534
        %v1537 = vunpack.c.l.s4 1934713408
        %v1538 = vunpack.c.0.s8 %v1537
        %v1539 = vlaneseq
        %v1540 = vshrl.u32 %v1539, 7
        %v1541 = vsub.s32 %v1538, %v1540
        %v1542 = vrot.slane %v1528, %v1541
        %v1543 = vcombine.low %v1510, %v1526
        %v1544 = vcombine.high %v1510, %v1526
        %v1546 = vunpack.c.l.s4 1934713408
        %v1547 = vunpack.c.0.s8 %v1546
        %v1548 = vlaneseq
        %v1549 = vshrl.u32 %v1548, 7
        %v1550 = vsub.s32 %v1547, %v1549
        %v1551 = vrot.slane %v1543, %v1550
        %v1553 = vunpack.c.l.s4 1934713408
        %v1554 = vunpack.c.0.s8 %v1553
        %v1555 = vlaneseq
        %v1556 = vshrl.u32 %v1555, 7
        %v1557 = vsub.s32 %v1554, %v1556
        %v1558 = vrot.slane %v1544, %v1557
        %v1559 = vcombine.high %v1535, 0.0
        %v1560 = vcombine.high %v1542, 0.0
        %v1561 = vcombine.high %v1551, 0.0
        %v1562 = vcombine.high %v1558, 0.0
        %v1563 = vcombine.low %v1535, %v1542
        %v1565 = vunpack.c.l.s4 1983009808
        %v1566 = vunpack.c.0.s8 %v1565
        %v1567 = vlaneseq
        %v1568 = vshrl.u32 %v1567, 7
        %v1569 = vsub.s32 %v1566, %v1568
        %v1570 = vrot.slane %v1563, %v1569
        %v1571 = vcombine.low %v1559, %v1560
        %v1573 = vunpack.c.l.s4 1983009808
        %v1574 = vunpack.c.0.s8 %v1573
        %v1575 = vlaneseq
        %v1576 = vshrl.u32 %v1575, 7
        %v1577 = vsub.s32 %v1574, %v1576
        %v1578 = vrot.slane %v1571, %v1577
        %v1579 = vcombine.low %v1551, %v1558
        %v1581 = vunpack.c.l.s4 1983009808
        %v1582 = vunpack.c.0.s8 %v1581
        %v1583 = vlaneseq
        %v1584 = vshrl.u32 %v1583, 7
        %v1585 = vsub.s32 %v1582, %v1584
        %v1586 = vrot.slane %v1579, %v1585
        %v1587 = vcombine.low %v1561, %v1562
        %v1589 = vunpack.c.l.s4 1983009808
        %v1590 = vunpack.c.0.s8 %v1589
        %v1591 = vlaneseq
        %v1592 = vshrl.u32 %v1591, 7
        %v1593 = vsub.s32 %v1590, %v1592
        %v1594 = vrot.slane %v1587, %v1593
        %v1595 = vcombine.low %v1570, %v1578
        %v1596 = vcombine.high %v1570, %v1578
        %v1598 = vunpack.c.l.s4 1934713408
        %v1599 = vunpack.c.0.s8 %v1598
        %v1600 = vlaneseq
        %v1601 = vshrl.u32 %v1600, 7
        %v1602 = vsub.s32 %v1599, %v1601
        %v1603 = vrot.slane %v1595, %v1602
        %v1605 = vunpack.c.l.s4 1934713408
        %v1606 = vunpack.c.0.s8 %v1605
        %v1607 = vlaneseq
        %v1608 = vshrl.u32 %v1607, 7
        %v1609 = vsub.s32 %v1606, %v1608
        %v1610 = vrot.slane %v1596, %v1609
        %v1611 = vcombine.low %v1586, %v1594
        %v1612 = vcombine.high %v1586, %v1594
        %v1614 = vunpack.c.l.s4 1934713408
        %v1615 = vunpack.c.0.s8 %v1614
        %v1616 = vlaneseq
        %v1617 = vshrl.u32 %v1616, 7
        %v1618 = vsub.s32 %v1615, %v1617
        %v1619 = vrot.slane %v1611, %v1618
        %v1621 = vunpack.c.l.s4 1934713408
        %v1622 = vunpack.c.0.s8 %v1621
        %v1623 = vlaneseq
        %v1624 = vshrl.u32 %v1623, 7
        %v1625 = vsub.s32 %v1622, %v1624
        %v1626 = vrot.slane %v1612, %v1625
        %v1627 = vcombine.low %v1603, %v1619
        %v1628 = vcombine.high %v1603, %v1619
        %v1629 = vcombine.low %v1610, %v1626
        %v1630 = vcombine.high %v1610, %v1626
        %1632 = vrot.lane.b32.xlu0 %v1628, 32
        %v1633 = vpop.permute.xlu0 %1632
        %1636 = vrot.lane.b32.xlu0 %v1629, 64
        %v1637 = vpop.permute.xlu0 %1636
        %1640 = vrot.lane.b32.xlu0 %v1630, 96
        %v1641 = vpop.permute.xlu0 %1640
        %v1643 = vsel %vm1077, %v1627, %v1633
        %vm1644 = vcmask 523264
        %v1645 = vsel %vm1644, %v1643, %v1637
        %vm1646 = vcmask 785408
        %v1647 = vsel %vm1646, %v1645, %v1641
        %v1648 = vpack.c.bf16 %v1647, %v1647
        %v1649 = vld [vmem:[%s517] sm:$0xf]
        %v1650 = vld [vmem:[%s517 + $0x4] sm:$0xf]
        %v1651 = vld [vmem:[%s517 + $0x8] sm:$0xf]
        %v1652 = vld [vmem:[%s517 + $0xc] sm:$0xf]
        %v1653 = vld [vmem:[%s517 + $0x10] sm:$0xf]
        %v1654 = vld [vmem:[%s517 + $0x14] sm:$0xf]
        %v1655 = vld [vmem:[%s517 + $0x18] sm:$0xf]
        %v1656 = vld [vmem:[%s517 + $0x1c] sm:$0xf]
        %v1657 = vld [vmem:[%s517 + $0x20] sm:$0xf]
        %v1658 = vld [vmem:[%s517 + $0x24] sm:$0xf]
        %v1659 = vld [vmem:[%s517 + $0x28] sm:$0xf]
        %v1660 = vld [vmem:[%s517 + $0x2c] sm:$0xf]
        %v1661 = vld [vmem:[%s517 + $0x30] sm:$0xf]
        %v1662 = vld [vmem:[%s517 + $0x34] sm:$0xf]
        %v1663 = vld [vmem:[%s517 + $0x38] sm:$0xf]
        %v1664 = vld [vmem:[%s517 + $0x3c] sm:$0xf]
        %v1681 = vunpack.c.l.b16 %v1649
        %v1682 = vunpack.c.l.b16 %v1650
        %v1683 = vunpack.c.l.b16 %v1651
        %v1684 = vunpack.c.l.b16 %v1652
        %v1685 = vunpack.c.l.b16 %v1653
        %v1686 = vunpack.c.l.b16 %v1654
        %v1687 = vunpack.c.l.b16 %v1655
        %v1688 = vunpack.c.l.b16 %v1656
        %v1689 = vunpack.c.l.b16 %v1657
        %v1690 = vunpack.c.l.b16 %v1658
        %v1691 = vunpack.c.l.b16 %v1659
        %v1692 = vunpack.c.l.b16 %v1660
        %v1693 = vunpack.c.l.b16 %v1661
        %v1694 = vunpack.c.l.b16 %v1662
        %v1695 = vunpack.c.l.b16 %v1663
        %v1696 = vunpack.c.l.b16 %v1664
        %v1697 = vpack.c.b16 %v1682, %v1681
        %v1698 = vpack.c.b16 %v1684, %v1683
        %v1699 = vpack.c.b16 %v1686, %v1685
        %v1700 = vpack.c.b16 %v1688, %v1687
        %v1701 = vpack.c.b16 %v1690, %v1689
        %v1702 = vpack.c.b16 %v1692, %v1691
        %v1703 = vpack.c.b16 %v1694, %v1693
        %v1704 = vpack.c.b16 %v1696, %v1695
        %1713 = vmatprep.subr.bf16.mxu0 0
        %1714 = vmatpush1.bf16.msra.mxu0 %v1697
        %1715 = vmatprep.subr.bf16.mxu0 0
        %1716 = vmatpush1.bf16.msra.mxu0 %v1698
        %1717 = vmatprep.subr.bf16.mxu0 0
        %1718 = vmatpush1.bf16.msra.mxu0 %v1699
        %1719 = vmatprep.subr.bf16.mxu0 0
        %1720 = vmatpush1.bf16.msra.mxu0 %v1700
        %1721 = vmatprep.subr.bf16.mxu0 0
        %1722 = vmatpush1.bf16.msra.mxu0 %v1701
        %1723 = vmatprep.subr.bf16.mxu0 0
        %1724 = vmatpush1.bf16.msra.mxu0 %v1702
        %1725 = vmatprep.subr.bf16.mxu0 0
        %1726 = vmatpush1.bf16.msra.mxu0 %v1703
        %1727 = vmatprep.subr.bf16.mxu0 0
        %1728 = vmatpush1.bf16.msra.mxu0 %v1704
        %1729 = vmatprep.subr.bf16.mxu0 0
        %1730 = vmatpush1.bf16.msra.mxu0 0
        %1731 = vmatprep.subr.bf16.mxu0 0
        %1732 = vmatpush1.bf16.msra.mxu0 0
        %1733 = vmatprep.subr.bf16.mxu0 0
        %1734 = vmatpush1.bf16.msra.mxu0 0
        %1735 = vmatprep.subr.bf16.mxu0 0
        %1736 = vmatpush1.bf16.msra.mxu0 0
        %1737 = vmatprep.subr.bf16.mxu0 0
        %1738 = vmatpush1.bf16.msra.mxu0 0
        %1739 = vmatprep.subr.bf16.mxu0 0
        %1740 = vmatpush1.bf16.msra.mxu0 0
        %1741 = vmatprep.subr.bf16.mxu0 0
        %1742 = vmatpush1.bf16.msra.mxu0 0
        %1743 = vmatprep.subr.bf16.mxu0 0
        %1744 = vmatpush1.bf16.msra.mxu0 0
        %1745 = vmatprep.mubr.bf16.mxu0 0
        %1746 = vmatmul.mubr.bf16.gmra.mrb[0].mxu0 %v1648
        %v1747 = vpop.f32.mrb[0].mxu0
        %v1748 = vadd.f32 0.0, %v1747
        %v1749 = vpop.f32.mrb[0].mxu0
        %v1750 = vpop.f32.mrb[0].mxu0
        %v1751 = vpop.f32.mrb[0].mxu0
        %1752 = vdwg.mxu0
        %v1753 = vld [vmem:[%s443] sm:$0xff]
        %v1754 = vld [vmem:[%s443 + $0x8] sm:$0xff]
        %v1755 = vld [vmem:[%s443 + $0x10] sm:$0xff]
        %v1756 = vld [vmem:[%s443 + $0x18] sm:$0xff]
        %v1757 = vld [vmem:[%s443 + $0x20] sm:$0xff]
        %v1758 = vld [vmem:[%s443 + $0x28] sm:$0xff]
        %v1759 = vld [vmem:[%s443 + $0x30] sm:$0xff]
        %v1760 = vld [vmem:[%s443 + $0x38] sm:$0xff]
        %v1761 = vld [vmem:[%s443 + $0x40] sm:$0xff]
        %v1762 = vld [vmem:[%s443 + $0x48] sm:$0xff]
        %v1763 = vld [vmem:[%s443 + $0x50] sm:$0xff]
        %v1764 = vld [vmem:[%s443 + $0x58] sm:$0xff]
        %v1765 = vld [vmem:[%s443 + $0x60] sm:$0xff]
        %v1766 = vld [vmem:[%s443 + $0x68] sm:$0xff]
        %v1767 = vld [vmem:[%s443 + $0x70] sm:$0xff]
        %v1768 = vld [vmem:[%s443 + $0x78] sm:$0xff]
        %v1769 = vld [vmem:[%s443 + $0x80] sm:$0xff]
        %v1770 = vld [vmem:[%s443 + $0x88] sm:$0xff]
        %v1771 = vld [vmem:[%s443 + $0x90] sm:$0xff]
        %v1772 = vld [vmem:[%s443 + $0x98] sm:$0xff]
        %v1773 = vld [vmem:[%s443 + $0xa0] sm:$0xff]
        %v1774 = vld [vmem:[%s443 + $0xa8] sm:$0xff]
        %v1775 = vld [vmem:[%s443 + $0xb0] sm:$0xff]
        %v1776 = vld [vmem:[%s443 + $0xb8] sm:$0xff]
        %v1777 = vld [vmem:[%s443 + $0xc0] sm:$0xff]
        %v1778 = vld [vmem:[%s443 + $0xc8] sm:$0xff]
        %v1779 = vld [vmem:[%s443 + $0xd0] sm:$0xff]
        %v1780 = vld [vmem:[%s443 + $0xd8] sm:$0xff]
        %v1781 = vld [vmem:[%s443 + $0xe0] sm:$0xff]
        %v1782 = vld [vmem:[%s443 + $0xe8] sm:$0xff]
        %v1783 = vld [vmem:[%s443 + $0xf0] sm:$0xff]
        %v1784 = vld [vmem:[%s443 + $0xf8] sm:$0xff]
        %v1817 = vunpack.c.l.b16 %v1753
        %v1818 = vunpack.c.h.b16 %v1753
        %v1819 = vunpack.c.l.b16 %v1754
        %v1820 = vunpack.c.h.b16 %v1754
        %v1821 = vunpack.c.l.b16 %v1755
        %v1822 = vunpack.c.h.b16 %v1755
        %v1823 = vunpack.c.l.b16 %v1756
        %v1824 = vunpack.c.h.b16 %v1756
        %v1825 = vunpack.c.l.b16 %v1757
        %v1826 = vunpack.c.h.b16 %v1757
        %v1827 = vunpack.c.l.b16 %v1758
        %v1828 = vunpack.c.h.b16 %v1758
        %v1829 = vunpack.c.l.b16 %v1759
        %v1830 = vunpack.c.h.b16 %v1759
        %v1831 = vunpack.c.l.b16 %v1760
        %v1832 = vunpack.c.h.b16 %v1760
        %v1833 = vunpack.c.l.b16 %v1761
        %v1834 = vunpack.c.h.b16 %v1761
        %v1835 = vunpack.c.l.b16 %v1762
        %v1836 = vunpack.c.h.b16 %v1762
        %v1837 = vunpack.c.l.b16 %v1763
        %v1838 = vunpack.c.h.b16 %v1763
        %v1839 = vunpack.c.l.b16 %v1764
        %v1840 = vunpack.c.h.b16 %v1764
        %v1841 = vunpack.c.l.b16 %v1765
        %v1842 = vunpack.c.h.b16 %v1765
        %v1843 = vunpack.c.l.b16 %v1766
        %v1844 = vunpack.c.h.b16 %v1766
        %v1845 = vunpack.c.l.b16 %v1767
        %v1846 = vunpack.c.h.b16 %v1767
        %v1847 = vunpack.c.l.b16 %v1768
        %v1848 = vunpack.c.h.b16 %v1768
        %v1849 = vunpack.c.l.b16 %v1769
        %v1850 = vunpack.c.h.b16 %v1769
        %v1851 = vunpack.c.l.b16 %v1770
        %v1852 = vunpack.c.h.b16 %v1770
        %v1853 = vunpack.c.l.b16 %v1771
        %v1854 = vunpack.c.h.b16 %v1771
        %v1855 = vunpack.c.l.b16 %v1772
        %v1856 = vunpack.c.h.b16 %v1772
        %v1857 = vunpack.c.l.b16 %v1773
        %v1858 = vunpack.c.h.b16 %v1773
        %v1859 = vunpack.c.l.b16 %v1774
        %v1860 = vunpack.c.h.b16 %v1774
        %v1861 = vunpack.c.l.b16 %v1775
        %v1862 = vunpack.c.h.b16 %v1775
        %v1863 = vunpack.c.l.b16 %v1776
        %v1864 = vunpack.c.h.b16 %v1776
        %v1865 = vunpack.c.l.b16 %v1777
        %v1866 = vunpack.c.h.b16 %v1777
        %v1867 = vunpack.c.l.b16 %v1778
        %v1868 = vunpack.c.h.b16 %v1778
        %v1869 = vunpack.c.l.b16 %v1779
        %v1870 = vunpack.c.h.b16 %v1779
        %v1871 = vunpack.c.l.b16 %v1780
        %v1872 = vunpack.c.h.b16 %v1780
        %v1873 = vunpack.c.l.b16 %v1781
        %v1874 = vunpack.c.h.b16 %v1781
        %v1875 = vunpack.c.l.b16 %v1782
        %v1876 = vunpack.c.h.b16 %v1782
        %v1877 = vunpack.c.l.b16 %v1783
        %v1878 = vunpack.c.h.b16 %v1783
        %v1879 = vunpack.c.l.b16 %v1784
        %v1880 = vunpack.c.h.b16 %v1784
        %v1881 = vpack.c.b16 %v1821, %v1817
        %v1882 = vpack.c.b16 %v1822, %v1818
        %v1883 = vpack.c.b16 %v1823, %v1819
        %v1884 = vpack.c.b16 %v1824, %v1820
        %v1885 = vpack.c.b16 %v1829, %v1825
        %v1886 = vpack.c.b16 %v1830, %v1826
        %v1887 = vpack.c.b16 %v1831, %v1827
        %v1888 = vpack.c.b16 %v1832, %v1828
        %v1889 = vpack.c.b16 %v1837, %v1833
        %v1890 = vpack.c.b16 %v1838, %v1834
        %v1891 = vpack.c.b16 %v1839, %v1835
        %v1892 = vpack.c.b16 %v1840, %v1836
        %v1893 = vpack.c.b16 %v1845, %v1841
        %v1894 = vpack.c.b16 %v1846, %v1842
        %v1895 = vpack.c.b16 %v1847, %v1843
        %v1896 = vpack.c.b16 %v1848, %v1844
        %v1897 = vpack.c.b16 %v1853, %v1849
        %v1898 = vpack.c.b16 %v1854, %v1850
        %v1899 = vpack.c.b16 %v1855, %v1851
        %v1900 = vpack.c.b16 %v1856, %v1852
        %v1901 = vpack.c.b16 %v1861, %v1857
        %v1902 = vpack.c.b16 %v1862, %v1858
        %v1903 = vpack.c.b16 %v1863, %v1859
        %v1904 = vpack.c.b16 %v1864, %v1860
        %v1905 = vpack.c.b16 %v1869, %v1865
        %v1906 = vpack.c.b16 %v1870, %v1866
        %v1907 = vpack.c.b16 %v1871, %v1867
        %v1908 = vpack.c.b16 %v1872, %v1868
        %v1909 = vpack.c.b16 %v1877, %v1873
        %v1910 = vpack.c.b16 %v1878, %v1874
        %v1911 = vpack.c.b16 %v1879, %v1875
        %v1912 = vpack.c.b16 %v1880, %v1876
        %1945 = vmatprep.subr.bf16.mxu0 %v1882
        %1946 = vmatpush1.bf16.msra.mxu0 %v1881
        %1947 = vmatprep.subr.bf16.mxu0 %v1886
        %1948 = vmatpush1.bf16.msra.mxu0 %v1885
        %1949 = vmatprep.subr.bf16.mxu0 %v1890
        %1950 = vmatpush1.bf16.msra.mxu0 %v1889
        %1951 = vmatprep.subr.bf16.mxu0 %v1894
        %1952 = vmatpush1.bf16.msra.mxu0 %v1893
        %1953 = vmatprep.subr.bf16.mxu0 %v1898
        %1954 = vmatpush1.bf16.msra.mxu0 %v1897
        %1955 = vmatprep.subr.bf16.mxu0 %v1902
        %1956 = vmatpush1.bf16.msra.mxu0 %v1901
        %1957 = vmatprep.subr.bf16.mxu0 %v1906
        %1958 = vmatpush1.bf16.msra.mxu0 %v1905
        %1959 = vmatprep.subr.bf16.mxu0 %v1910
        %1960 = vmatpush1.bf16.msra.mxu0 %v1909
        %1961 = vmatprep.subr.bf16.mxu0 0
        %1962 = vmatpush1.bf16.msra.mxu0 0
        %1963 = vmatprep.subr.bf16.mxu0 0
        %1964 = vmatpush1.bf16.msra.mxu0 0
        %1965 = vmatprep.subr.bf16.mxu0 0
        %1966 = vmatpush1.bf16.msra.mxu0 0
        %1967 = vmatprep.subr.bf16.mxu0 0
        %1968 = vmatpush1.bf16.msra.mxu0 0
        %1969 = vmatprep.subr.bf16.mxu0 0
        %1970 = vmatpush1.bf16.msra.mxu0 0
        %1971 = vmatprep.subr.bf16.mxu0 0
        %1972 = vmatpush1.bf16.msra.mxu0 0
        %1973 = vmatprep.subr.bf16.mxu0 0
        %1974 = vmatpush1.bf16.msra.mxu0 0
        %1975 = vmatprep.subr.bf16.mxu0 0
        %1976 = vmatpush1.bf16.msra.mxu0 0
        %1977 = vmatprep.mubr.bf16.mxu0 0
        %1978 = vmatmul.mubr.bf16.gmra.mrb[0].mxu0 %v554
        %v1979 = vpop.f32.mrb[0].mxu0
        %v1980 = vadd.f32 0.0, %v1979
        %v1981 = vpop.f32.mrb[0].mxu0
        %v1982 = vadd.f32 0.0, %v1981
        %v1983 = vpop.f32.mrb[0].mxu0
        %v1984 = vpop.f32.mrb[0].mxu0
        %1985 = vdwg.mxu0
        %1986 = vmatprep.subr.bf16.mxu0 %v1884
        %1987 = vmatpush1.bf16.msra.mxu0 %v1883
        %1988 = vmatprep.subr.bf16.mxu0 %v1888
        %1989 = vmatpush1.bf16.msra.mxu0 %v1887
        %1990 = vmatprep.subr.bf16.mxu0 %v1892
        %1991 = vmatpush1.bf16.msra.mxu0 %v1891
        %1992 = vmatprep.subr.bf16.mxu0 %v1896
        %1993 = vmatpush1.bf16.msra.mxu0 %v1895
        %1994 = vmatprep.subr.bf16.mxu0 %v1900
        %1995 = vmatpush1.bf16.msra.mxu0 %v1899
        %1996 = vmatprep.subr.bf16.mxu0 %v1904
        %1997 = vmatpush1.bf16.msra.mxu0 %v1903
        %1998 = vmatprep.subr.bf16.mxu0 %v1908
        %1999 = vmatpush1.bf16.msra.mxu0 %v1907
        %2000 = vmatprep.subr.bf16.mxu0 %v1912
        %2001 = vmatpush1.bf16.msra.mxu0 %v1911
        %2002 = vmatprep.subr.bf16.mxu0 0
        %2003 = vmatpush1.bf16.msra.mxu0 0
        %2004 = vmatprep.subr.bf16.mxu0 0
        %2005 = vmatpush1.bf16.msra.mxu0 0
        %2006 = vmatprep.subr.bf16.mxu0 0
        %2007 = vmatpush1.bf16.msra.mxu0 0
        %2008 = vmatprep.subr.bf16.mxu0 0
        %2009 = vmatpush1.bf16.msra.mxu0 0
        %2010 = vmatprep.subr.bf16.mxu0 0
        %2011 = vmatpush1.bf16.msra.mxu0 0
        %2012 = vmatprep.subr.bf16.mxu0 0
        %2013 = vmatpush1.bf16.msra.mxu0 0
        %2014 = vmatprep.subr.bf16.mxu0 0
        %2015 = vmatpush1.bf16.msra.mxu0 0
        %2016 = vmatprep.subr.bf16.mxu0 0
        %2017 = vmatpush1.bf16.msra.mxu0 0
        %2018 = vmatprep.mubr.bf16.mxu0 0
        %2019 = vmatmul.mubr.bf16.gmra.mrb[0].mxu0 %v554
        %v2020 = vpop.f32.mrb[0].mxu0
        %v2021 = vadd.f32 0.0, %v2020
        %v2022 = vpop.f32.mrb[0].mxu0
        %v2023 = vadd.f32 0.0, %v2022
        %v2024 = vpop.f32.mrb[0].mxu0
        %v2025 = vpop.f32.mrb[0].mxu0
        %2026 = vdwg.mxu0
        %v2027 = vmul.f32 %v1980, 0.5
        %v2028 = vmul.f32 %v1982, 0.5
        %v2029 = vmul.f32 %v2021, 0.5
        %v2030 = vmul.f32 %v2023, 0.5
        %v2031 = vmul.f32 %v1980, 0.044715
        %v2032 = vmul.f32 %v1982, 0.044715
        %v2033 = vmul.f32 %v2021, 0.044715
        %v2034 = vmul.f32 %v2023, 0.044715
        %v2035 = vmul.f32 %v2031, %v1980
        %v2036 = vmul.f32 %v2032, %v1982
        %v2037 = vmul.f32 %v2033, %v2021
        %v2038 = vmul.f32 %v2034, %v2023
        %v2039 = vmul.f32 %v2035, %v1980
        %v2040 = vmul.f32 %v2036, %v1982
        %v2041 = vmul.f32 %v2037, %v2021
        %v2042 = vmul.f32 %v2038, %v2023
        %v2043 = vadd.f32 %v1980, %v2039
        %v2044 = vadd.f32 %v1982, %v2040
        %v2045 = vadd.f32 %v2021, %v2041
        %v2046 = vadd.f32 %v2023, %v2042
        %v2047 = vmul.f32 %v2043, 0.7978846
        %v2048 = vmul.f32 %v2044, 0.7978846
        %v2049 = vmul.f32 %v2045, 0.7978846
        %v2050 = vmul.f32 %v2046, 0.7978846
        %v2051 = vtanh.pop %v2047
        %v2052 = vtanh.pop %v2048
        %v2053 = vtanh.pop %v2049
        %v2054 = vtanh.pop %v2050
        %v2055 = vadd.f32 %v2051, 1.0
        %v2056 = vadd.f32 %v2052, 1.0
        %v2057 = vadd.f32 %v2053, 1.0
        %v2058 = vadd.f32 %v2054, 1.0
        %v2059 = vmul.f32 %v2027, %v2055
        %v2060 = vmul.f32 %v2028, %v2056
        %v2061 = vmul.f32 %v2029, %v2057
        %v2062 = vmul.f32 %v2030, %v2058
        %v2063 = vpack.c.bf16 %v2059, %v2059
        %v2064 = vpack.c.bf16 %v2060, %v2060
        %v2065 = vpack.c.bf16 %v2061, %v2061
        %v2066 = vpack.c.bf16 %v2062, %v2062
        %v2067 = vld [vmem:[%s452] sm:$0xf]
        %v2068 = vld [vmem:[%s452 + $0x4] sm:$0xf]
        %v2069 = vld [vmem:[%s452 + $0x8] sm:$0xf]
        %v2070 = vld [vmem:[%s452 + $0xc] sm:$0xf]
        %v2071 = vld [vmem:[%s452 + $0x10] sm:$0xf]
        %v2072 = vld [vmem:[%s452 + $0x14] sm:$0xf]
        %v2073 = vld [vmem:[%s452 + $0x18] sm:$0xf]
        %v2074 = vld [vmem:[%s452 + $0x1c] sm:$0xf]
        %v2075 = vld [vmem:[%s452 + $0x20] sm:$0xf]
        %v2076 = vld [vmem:[%s452 + $0x24] sm:$0xf]
        %v2077 = vld [vmem:[%s452 + $0x28] sm:$0xf]
        %v2078 = vld [vmem:[%s452 + $0x2c] sm:$0xf]
        %v2079 = vld [vmem:[%s452 + $0x30] sm:$0xf]
        %v2080 = vld [vmem:[%s452 + $0x34] sm:$0xf]
        %v2081 = vld [vmem:[%s452 + $0x38] sm:$0xf]
        %v2082 = vld [vmem:[%s452 + $0x3c] sm:$0xf]
        %v2083 = vld [vmem:[%s452 + $0x40] sm:$0xf]
        %v2084 = vld [vmem:[%s452 + $0x44] sm:$0xf]
        %v2085 = vld [vmem:[%s452 + $0x48] sm:$0xf]
        %v2086 = vld [vmem:[%s452 + $0x4c] sm:$0xf]
        %v2087 = vld [vmem:[%s452 + $0x50] sm:$0xf]
        %v2088 = vld [vmem:[%s452 + $0x54] sm:$0xf]
        %v2089 = vld [vmem:[%s452 + $0x58] sm:$0xf]
        %v2090 = vld [vmem:[%s452 + $0x5c] sm:$0xf]
        %v2091 = vld [vmem:[%s452 + $0x60] sm:$0xf]
        %v2092 = vld [vmem:[%s452 + $0x64] sm:$0xf]
        %v2093 = vld [vmem:[%s452 + $0x68] sm:$0xf]
        %v2094 = vld [vmem:[%s452 + $0x6c] sm:$0xf]
        %v2095 = vld [vmem:[%s452 + $0x70] sm:$0xf]
        %v2096 = vld [vmem:[%s452 + $0x74] sm:$0xf]
        %v2097 = vld [vmem:[%s452 + $0x78] sm:$0xf]
        %v2098 = vld [vmem:[%s452 + $0x7c] sm:$0xf]
        %v2099 = vld [vmem:[%s452 + $0x80] sm:$0xf]
        %v2100 = vld [vmem:[%s452 + $0x84] sm:$0xf]
        %v2101 = vld [vmem:[%s452 + $0x88] sm:$0xf]
        %v2102 = vld [vmem:[%s452 + $0x8c] sm:$0xf]
        %v2103 = vld [vmem:[%s452 + $0x90] sm:$0xf]
        %v2104 = vld [vmem:[%s452 + $0x94] sm:$0xf]
        %v2105 = vld [vmem:[%s452 + $0x98] sm:$0xf]
        %v2106 = vld [vmem:[%s452 + $0x9c] sm:$0xf]
        %v2107 = vld [vmem:[%s452 + $0xa0] sm:$0xf]
        %v2108 = vld [vmem:[%s452 + $0xa4] sm:$0xf]
        %v2109 = vld [vmem:[%s452 + $0xa8] sm:$0xf]
        %v2110 = vld [vmem:[%s452 + $0xac] sm:$0xf]
        %v2111 = vld [vmem:[%s452 + $0xb0] sm:$0xf]
        %v2112 = vld [vmem:[%s452 + $0xb4] sm:$0xf]
        %v2113 = vld [vmem:[%s452 + $0xb8] sm:$0xf]
        %v2114 = vld [vmem:[%s452 + $0xbc] sm:$0xf]
        %v2115 = vld [vmem:[%s452 + $0xc0] sm:$0xf]
        %v2116 = vld [vmem:[%s452 + $0xc4] sm:$0xf]
        %v2117 = vld [vmem:[%s452 + $0xc8] sm:$0xf]
        %v2118 = vld [vmem:[%s452 + $0xcc] sm:$0xf]
        %v2119 = vld [vmem:[%s452 + $0xd0] sm:$0xf]
        %v2120 = vld [vmem:[%s452 + $0xd4] sm:$0xf]
        %v2121 = vld [vmem:[%s452 + $0xd8] sm:$0xf]
        %v2122 = vld [vmem:[%s452 + $0xdc] sm:$0xf]
        %v2123 = vld [vmem:[%s452 + $0xe0] sm:$0xf]
        %v2124 = vld [vmem:[%s452 + $0xe4] sm:$0xf]
        %v2125 = vld [vmem:[%s452 + $0xe8] sm:$0xf]
        %v2126 = vld [vmem:[%s452 + $0xec] sm:$0xf]
        %v2127 = vld [vmem:[%s452 + $0xf0] sm:$0xf]
        %v2128 = vld [vmem:[%s452 + $0xf4] sm:$0xf]
        %v2129 = vld [vmem:[%s452 + $0xf8] sm:$0xf]
        %v2130 = vld [vmem:[%s452 + $0xfc] sm:$0xf]
        %v2195 = vunpack.c.l.b16 %v2067
        %v2196 = vunpack.c.l.b16 %v2068
        %v2197 = vunpack.c.l.b16 %v2069
        %v2198 = vunpack.c.l.b16 %v2070
        %v2199 = vunpack.c.l.b16 %v2071
        %v2200 = vunpack.c.l.b16 %v2072
        %v2201 = vunpack.c.l.b16 %v2073
        %v2202 = vunpack.c.l.b16 %v2074
        %v2203 = vunpack.c.l.b16 %v2075
        %v2204 = vunpack.c.l.b16 %v2076
        %v2205 = vunpack.c.l.b16 %v2077
        %v2206 = vunpack.c.l.b16 %v2078
        %v2207 = vunpack.c.l.b16 %v2079
        %v2208 = vunpack.c.l.b16 %v2080
        %v2209 = vunpack.c.l.b16 %v2081
        %v2210 = vunpack.c.l.b16 %v2082
        %v2211 = vunpack.c.l.b16 %v2083
        %v2212 = vunpack.c.l.b16 %v2084
        %v2213 = vunpack.c.l.b16 %v2085
        %v2214 = vunpack.c.l.b16 %v2086
        %v2215 = vunpack.c.l.b16 %v2087
        %v2216 = vunpack.c.l.b16 %v2088
        %v2217 = vunpack.c.l.b16 %v2089
        %v2218 = vunpack.c.l.b16 %v2090
        %v2219 = vunpack.c.l.b16 %v2091
        %v2220 = vunpack.c.l.b16 %v2092
        %v2221 = vunpack.c.l.b16 %v2093
        %v2222 = vunpack.c.l.b16 %v2094
        %v2223 = vunpack.c.l.b16 %v2095
        %v2224 = vunpack.c.l.b16 %v2096
        %v2225 = vunpack.c.l.b16 %v2097
        %v2226 = vunpack.c.l.b16 %v2098
        %v2227 = vunpack.c.l.b16 %v2099
        %v2228 = vunpack.c.l.b16 %v2100
        %v2229 = vunpack.c.l.b16 %v2101
        %v2230 = vunpack.c.l.b16 %v2102
        %v2231 = vunpack.c.l.b16 %v2103
        %v2232 = vunpack.c.l.b16 %v2104
        %v2233 = vunpack.c.l.b16 %v2105
        %v2234 = vunpack.c.l.b16 %v2106
        %v2235 = vunpack.c.l.b16 %v2107
        %v2236 = vunpack.c.l.b16 %v2108
        %v2237 = vunpack.c.l.b16 %v2109
        %v2238 = vunpack.c.l.b16 %v2110
        %v2239 = vunpack.c.l.b16 %v2111
        %v2240 = vunpack.c.l.b16 %v2112
        %v2241 = vunpack.c.l.b16 %v2113
        %v2242 = vunpack.c.l.b16 %v2114
        %v2243 = vunpack.c.l.b16 %v2115
        %v2244 = vunpack.c.l.b16 %v2116
        %v2245 = vunpack.c.l.b16 %v2117
        %v2246 = vunpack.c.l.b16 %v2118
        %v2247 = vunpack.c.l.b16 %v2119
        %v2248 = vunpack.c.l.b16 %v2120
        %v2249 = vunpack.c.l.b16 %v2121
        %v2250 = vunpack.c.l.b16 %v2122
        %v2251 = vunpack.c.l.b16 %v2123
        %v2252 = vunpack.c.l.b16 %v2124
        %v2253 = vunpack.c.l.b16 %v2125
        %v2254 = vunpack.c.l.b16 %v2126
        %v2255 = vunpack.c.l.b16 %v2127
        %v2256 = vunpack.c.l.b16 %v2128
        %v2257 = vunpack.c.l.b16 %v2129
        %v2258 = vunpack.c.l.b16 %v2130
        %v2259 = vpack.c.b16 %v2196, %v2195
        %v2260 = vpack.c.b16 %v2198, %v2197
        %v2261 = vpack.c.b16 %v2200, %v2199
        %v2262 = vpack.c.b16 %v2202, %v2201
        %v2263 = vpack.c.b16 %v2204, %v2203
        %v2264 = vpack.c.b16 %v2206, %v2205
        %v2265 = vpack.c.b16 %v2208, %v2207
        %v2266 = vpack.c.b16 %v2210, %v2209
        %v2267 = vpack.c.b16 %v2212, %v2211
        %v2268 = vpack.c.b16 %v2214, %v2213
        %v2269 = vpack.c.b16 %v2216, %v2215
        %v2270 = vpack.c.b16 %v2218, %v2217
        %v2271 = vpack.c.b16 %v2220, %v2219
        %v2272 = vpack.c.b16 %v2222, %v2221
        %v2273 = vpack.c.b16 %v2224, %v2223
        %v2274 = vpack.c.b16 %v2226, %v2225
        %v2275 = vpack.c.b16 %v2228, %v2227
        %v2276 = vpack.c.b16 %v2230, %v2229
        %v2277 = vpack.c.b16 %v2232, %v2231
        %v2278 = vpack.c.b16 %v2234, %v2233
        %v2279 = vpack.c.b16 %v2236, %v2235
        %v2280 = vpack.c.b16 %v2238, %v2237
        %v2281 = vpack.c.b16 %v2240, %v2239
        %v2282 = vpack.c.b16 %v2242, %v2241
        %v2283 = vpack.c.b16 %v2244, %v2243
        %v2284 = vpack.c.b16 %v2246, %v2245
        %v2285 = vpack.c.b16 %v2248, %v2247
        %v2286 = vpack.c.b16 %v2250, %v2249
        %v2287 = vpack.c.b16 %v2252, %v2251
        %v2288 = vpack.c.b16 %v2254, %v2253
        %v2289 = vpack.c.b16 %v2256, %v2255
        %v2290 = vpack.c.b16 %v2258, %v2257
        %2323 = vmatprep.subr.bf16.mxu0 0
        %2324 = vmatpush1.bf16.msra.mxu0 %v2259
        %2325 = vmatprep.subr.bf16.mxu0 0
        %2326 = vmatpush1.bf16.msra.mxu0 %v2260
        %2327 = vmatprep.subr.bf16.mxu0 0
        %2328 = vmatpush1.bf16.msra.mxu0 %v2261
        %2329 = vmatprep.subr.bf16.mxu0 0
        %2330 = vmatpush1.bf16.msra.mxu0 %v2262
        %2331 = vmatprep.subr.bf16.mxu0 0
        %2332 = vmatpush1.bf16.msra.mxu0 %v2263
        %2333 = vmatprep.subr.bf16.mxu0 0
        %2334 = vmatpush1.bf16.msra.mxu0 %v2264
        %2335 = vmatprep.subr.bf16.mxu0 0
        %2336 = vmatpush1.bf16.msra.mxu0 %v2265
        %2337 = vmatprep.subr.bf16.mxu0 0
        %2338 = vmatpush1.bf16.msra.mxu0 %v2266
        %2339 = vmatprep.subr.bf16.mxu0 0
        %2340 = vmatpush1.bf16.msra.mxu0 %v2267
        %2341 = vmatprep.subr.bf16.mxu0 0
        %2342 = vmatpush1.bf16.msra.mxu0 %v2268
        %2343 = vmatprep.subr.bf16.mxu0 0
        %2344 = vmatpush1.bf16.msra.mxu0 %v2269
        %2345 = vmatprep.subr.bf16.mxu0 0
        %2346 = vmatpush1.bf16.msra.mxu0 %v2270
        %2347 = vmatprep.subr.bf16.mxu0 0
        %2348 = vmatpush1.bf16.msra.mxu0 %v2271
        %2349 = vmatprep.subr.bf16.mxu0 0
        %2350 = vmatpush1.bf16.msra.mxu0 %v2272
        %2351 = vmatprep.subr.bf16.mxu0 0
        %2352 = vmatpush1.bf16.msra.mxu0 %v2273
        %2353 = vmatprep.subr.bf16.mxu0 0
        %2354 = vmatpush1.bf16.msra.mxu0 %v2274
        %2355 = vmatprep.mubr.bf16.mxu0 %v2064
        %2356 = vmatmul.mubr.bf16.gmra.mrb[0].mxu0 %v2063
        %v2357 = vpop.f32.mrb[0].mxu0
        %v2358 = vadd.f32 %v1748, %v2357
        %v2359 = vpop.f32.mrb[0].mxu0
        %v2360 = vpop.f32.mrb[0].mxu0
        %v2361 = vpop.f32.mrb[0].mxu0
        %2362 = vdwg.mxu0
        %2363 = vmatprep.subr.bf16.mxu0 0
        %2364 = vmatpush1.bf16.msra.mxu0 %v2275
        %2365 = vmatprep.subr.bf16.mxu0 0
        %2366 = vmatpush1.bf16.msra.mxu0 %v2276
        %2367 = vmatprep.subr.bf16.mxu0 0
        %2368 = vmatpush1.bf16.msra.mxu0 %v2277
        %2369 = vmatprep.subr.bf16.mxu0 0
        %2370 = vmatpush1.bf16.msra.mxu0 %v2278
        %2371 = vmatprep.subr.bf16.mxu0 0
        %2372 = vmatpush1.bf16.msra.mxu0 %v2279
        %2373 = vmatprep.subr.bf16.mxu0 0
        %2374 = vmatpush1.bf16.msra.mxu0 %v2280
        %2375 = vmatprep.subr.bf16.mxu0 0
        %2376 = vmatpush1.bf16.msra.mxu0 %v2281
        %2377 = vmatprep.subr.bf16.mxu0 0
        %2378 = vmatpush1.bf16.msra.mxu0 %v2282
        %2379 = vmatprep.subr.bf16.mxu0 0
        %2380 = vmatpush1.bf16.msra.mxu0 %v2283
        %2381 = vmatprep.subr.bf16.mxu0 0
        %2382 = vmatpush1.bf16.msra.mxu0 %v2284
        %2383 = vmatprep.subr.bf16.mxu0 0
        %2384 = vmatpush1.bf16.msra.mxu0 %v2285
        %2385 = vmatprep.subr.bf16.mxu0 0
        %2386 = vmatpush1.bf16.msra.mxu0 %v2286
        %2387 = vmatprep.subr.bf16.mxu0 0
        %2388 = vmatpush1.bf16.msra.mxu0 %v2287
        %2389 = vmatprep.subr.bf16.mxu0 0
        %2390 = vmatpush1.bf16.msra.mxu0 %v2288
        %2391 = vmatprep.subr.bf16.mxu0 0
        %2392 = vmatpush1.bf16.msra.mxu0 %v2289
        %2393 = vmatprep.subr.bf16.mxu0 0
        %2394 = vmatpush1.bf16.msra.mxu0 %v2290
        %2395 = vmatprep.mubr.bf16.mxu0 %v2066
        %2396 = vmatmul.mubr.bf16.gmra.mrb[0].mxu0 %v2065
        %v2397 = vpop.f32.mrb[0].mxu0
        %v2398 = vadd.f32 %v2358, %v2397
        %v2399 = vpop.f32.mrb[0].mxu0
        %v2400 = vpop.f32.mrb[0].mxu0
        %v2401 = vpop.f32.mrb[0].mxu0
        %2402 = vdwg.mxu0
        %v2403 = vadd.f32 %v2398, %v525
        %2404 = vst [vmem:[#allocation2] sm:$0xff] %v2403
        %p2405 = scmp.eq.s32.totalorder %s29, 1
        // Predicated region
        $region81: #{falcon_model_forward.1} parent=63 // pred_check
          %p2406 = pneg %p2405
        $region82: #{falcon_model_forward.1} parent=63 // pred_check_branch
          %2408 = sbr.rel (%p2406) target = $region84
        $region83: #{falcon_model_forward.1} parent=63 // pred_region
          %v2409 = vld [vmem:[#allocation2] sm:$0xff]
          %v2410 = vld [vmem:[%s9] sm:$0x1]
          %v2411 = vld [vmem:[%s10] sm:$0x1]
          %2412 = vadd.xlane.f32.xlu0 %v2409
          %v2413 = vpop.xlane.xlu0 %2412
          %v2414 = vmul.f32 %v2413, %v530
          %v2415 = vsub.f32 %v2409, %v2414
          %v2416 = vmul.f32 %v2415, %v2415
          %2417 = vadd.xlane.f32.xlu0 %v2416
          %v2418 = vpop.xlane.xlu0 %2417
          %v2419 = vmul.f32 %v2418, %v530
          %v2420 = vadd.f32 %v2419, 1e-05
          %v2421 = vrsqrt.pop %v2420
          %v2422 = vmul.f32 %v2415, %v2421
          %v2424 = vlaneseq
          %v2425 = vshrl.u32 %v2424, 7
          %v2426 = vsub.s32 0, %v2425
          %v2427 = vrot.slane %v2410, %v2426
          %v2429 = vmul.f32 %v2422, %v2427
          %v2431 = vlaneseq
          %v2432 = vshrl.u32 %v2431, 7
          %v2433 = vsub.s32 0, %v2432
          %v2434 = vrot.slane %v2411, %v2433
          %v2436 = vadd.f32 %v2429, %v2434
          %2437 = vst [vmem:[#allocation9] sm:$0xff] %v2436
        $region84: #{falcon_model_forward.1} parent=63 // pred_fallthru
          _
        // Predicated region
        $region85: #{falcon_model_forward.1} parent=63 // pred_check
          %p2438 = pneg %p303
        $region86: #{falcon_model_forward.1} parent=63 // pred_check_branch
          %2440 = sbr.rel (%p2438) target = $region88
        $region87: #{falcon_model_forward.1} parent=63 // pred_region
          %s2442 = ssub.s32 128, 128
          %2443 = vsyncadd [#allocation5], %s2442
          %s2445 = sshll.u32 [#allocation9], 4
          %s2446 = int_to_ptr.vmem [resolvable:$true] %s2445
          %2448 = dma.vmem_to_hbm [thread:$0]  %s2446, 128, %s11, [#allocation5]
        $region88: #{falcon_model_forward.1} parent=63 // pred_fallthru
          _
        // Predicated region
        $region89: #{falcon_model_forward.1} parent=63 // pred_check
          %p2449 = pneg %p303
        $region90: #{falcon_model_forward.1} parent=63 // pred_check_branch
          %2451 = sbr.rel (%p2449) target = $region92
        $region91: #{falcon_model_forward.1} parent=63 // pred_region
          %2452 = dma.done [#allocation5], 128
        $region92: #{falcon_model_forward.1} parent=63 // pred_fallthru
          _
      $region64: #{falcon_model_forward.1} parent=5 // pred_fallthru
        _
      %p2453 = scmp.le.s32.totalorder 2, %s24
      // Predicated region
      $region93: #{falcon_model_forward.1} parent=5 // pred_check
        %p2454 = pneg %p2453
      $region94: #{falcon_model_forward.1} parent=5 // pred_check_branch
        %2456 = sbr.rel (%p2454) target = $region96
      $region95: #{falcon_model_forward.1} parent=5 // pred_region
        %s2457 = ssub.s32 %s24, 2
      $region96: #{falcon_model_forward.1} parent=5 // pred_fallthru
        _
    $region6: #{falcon_model_forward.1} parent=1 // loop_footer
      %s28 = sadd.s32 1, %s24
    $region7: #{falcon_model_forward.1} parent=1 // loop_footer_branch
      %23 = sbr.rel target = $region3
    $region8: #{falcon_model_forward.1} parent=1 // loop_exit
      _
    %2458 = vsyncpa [#allocation4], 1
    %s2459 = scalar_lea.sflag [#allocation4], 1
    %2460 = vsyncpa %s2459, 1
    %2461 = vsyncpa [#allocation7], 1
    %s2462 = scalar_lea.sflag [#allocation7], 1
    %2463 = vsyncpa %s2462, 1
    %2464 = vsyncpa [#allocation5], 1
    %s2465 = scalar_lea.sflag [#allocation5], 1
    %2466 = vsyncpa %s2465, 1

</llo_original>
